<compile_context>
chip_gen: v7x
topology: tpu7x:2x2x1
jax: 0.10.0
libtpu: 0.0.40
codegen_flags: <defaults>
</compile_context>

<pallas_src>
import functools
import math

import jax
import jax.numpy as jnp
from jax.experimental import pallas as pl
from jax.experimental.pallas import tpu as pltpu

RMS_EPS = 1e-6  # TODO(synk): exact eps of the reference RMSNorm is unknown; 1e-6 assumed.


def _rmsnorm(x, gamma):
    ms = jnp.mean(x * x, axis=-1, keepdims=True)
    return x * jax.lax.rsqrt(ms + RMS_EPS) * gamma


def _encoder_kernel(x_ref, wqkv_ref, wo_ref, bo_ref, wff_ref, ga_ref, gf_ref,
                    out_ref, h_ref, *, num_heads, batch_tile, seq_len,
                    resident_weights):
    """One (batch-block, layer) grid step of the transformer encoder."""
    layer = pl.program_id(1)
    Bt, S = batch_tile, seq_len

    # Layer 0: load this batch block into the resident f32 residual-stream scratch.
    @pl.when(layer == 0)
    def _():
        blk = x_ref[...]                                   # (Bt, S, D)
        h_ref[...] = blk.reshape(Bt * S, blk.shape[-1]).astype(jnp.float32)

    x = h_ref[...]                                         # (Bt*S, D) f32
    M, D = x.shape
    hd = D // num_heads

    widx = layer if resident_weights else 0
    wqkv = wqkv_ref[widx]                                  # (D, 3D) bf16 (Wq pre-scaled)
    wo = wo_ref[widx]                                      # (D, D)  bf16
    wff = wff_ref[widx]                                    # (D, D)  bf16
    bo = bo_ref[widx]                                      # (1, D)  f32
    g_attn = ga_ref[widx]                                  # (1, D)  f32
    g_ffn = gf_ref[widx]                                   # (1, D)  f32

    # ---- fused QKV projection over all Bt*S rows: one bf16 matmul, f32 acc.
    qkv = jnp.dot(x.astype(jnp.bfloat16), wqkv,
                  preferred_element_type=jnp.float32)      # (Bt*S, 3D) f32
    qkv_bf = qkv.astype(jnp.bfloat16)                      # cast once, reused per head

    bias_slab = jnp.broadcast_to(bo, (S, D))               # hoisted attention-acc init

    # ---- multi-head self-attention (unmasked: do_cross_attn=False -> no mask).
    #      Heads and the Bt sequences are short static loops of 2-D MXU ops; the
    #      output projection is folded into the head loop as a K-split
    #      (ctx_h @ Wo[h*hd:(h+1)*hd, :]) -> no cross-lane concat of heads.
    # TODO(synk): for large S switch to a flash-style online-softmax KV-tile loop
    # instead of materializing the per-head (S, S) f32 scores.
    for b in range(Bt):
        r0 = b * S
        acc = bias_slab                                    # start from output-proj bias
        for h in range(num_heads):
            q = qkv_bf[r0:r0 + S, h * hd:(h + 1) * hd]                    # (S, hd)
            k = qkv_bf[r0:r0 + S, D + h * hd:D + (h + 1) * hd]            # (S, hd)
            v = qkv_bf[r0:r0 + S, 2 * D + h * hd:2 * D + (h + 1) * hd]    # (S, hd)
            # q @ k^T in NT form (no explicit transpose). Scale already in Wq.
            s = jax.lax.dot_general(q, k, (((1,), (1,)), ((), ())),
                                    preferred_element_type=jnp.float32)   # (S, S)
            s = s - jnp.max(s, axis=-1, keepdims=True)
            p = jnp.exp(s)
            # approx reciprocal (EUP slot); use exact division if bitwise parity needed.
            inv = pl.reciprocal(jnp.sum(p, axis=-1, keepdims=True), approx=True)
            p = (p * inv).astype(jnp.bfloat16)
            ctx = jnp.dot(p, v, preferred_element_type=jnp.float32)       # (S, hd)
            wo_h = wo[h * hd:(h + 1) * hd, :]                             # (hd, D)
            acc = acc + jnp.dot(ctx.astype(jnp.bfloat16), wo_h,
                                preferred_element_type=jnp.float32)
        # residual + RMSNorm; the x-rows of this block are no longer needed, so
        # write the post-attention activations back into the scratch in place.
        h_ref[r0:r0 + S, :] = _rmsnorm(x[r0:r0 + S, :] + acc, g_attn)

    h1 = h_ref[...]                                        # (Bt*S, D) f32

    # ---- bias-free feed-forward projection, residual + RMSNorm (f32).
    ff = jnp.dot(h1.astype(jnp.bfloat16), wff, preferred_element_type=jnp.float32)
    h2 = _rmsnorm(h1 + ff, g_ffn)
    h_ref[...] = h2                                        # carry to next layer

    # Only the last layer writes the HBM output block (saves per-layer cast+store).
    @pl.when(layer == pl.num_programs(1) - 1)
    def _():
        out_ref[...] = h2.reshape(Bt, S, D).astype(out_ref.dtype)


def _plan(B, S, D, L, in_itemsize, out_itemsize):
    """Pick the batch tile, weight-residency mode and VMEM limit from shapes."""
    try:
        vmem_cap = int(pltpu.get_tpu_info().vmem_capacity_bytes)
    except Exception:
        vmem_cap = 64 * 1024 * 1024                        # v7x-safe fallback
    budget = int(vmem_cap * 0.7)

    # Per-layer weight bytes: bf16 wqkv + wo + wff, f32 bo/g_attn/g_ffn.
    wpl = (3 * D * D + D * D + D * D) * 2 + 3 * D * 4
    resident_w = 2 * L * wpl                               # x2: default double-buffering
    streamed_w = 2 * wpl

    def act_bytes(bt):
        rows = bt * S
        io = 2 * rows * D * (in_itemsize + out_itemsize)   # double-buffered in/out blocks
        scratch = rows * D * 4                             # resident residual stream
        temps = rows * 3 * D * (4 + 2) + 4 * rows * D * 4 + S * S * 4   # qkv, h1/ff, scores
        return io + scratch + temps

    divisors = [d for d in range(1, B + 1) if B % d == 0]
    resident = resident_w + act_bytes(1) <= budget
    w_bytes = resident_w if resident else streamed_w
    fits = [d for d in divisors if w_bytes + act_bytes(d) <= budget] or [1]
    if resident:
        # Weights are fetched once anyway -> prefer >= 2 parallel batch steps so
        # both v7x TensorCores get work.
        pref = [d for d in fits if B // d >= 2]
        bt = max(pref) if pref else max(fits)
    else:
        # Weight-streaming regime: maximize the matmul M-dim (Bt*S) per weight fetch.
        bt = max(fits)
    vmem_limit = int(min(vmem_cap,
                         max(32 * 1024 * 1024, w_bytes + act_bytes(bt) + (4 << 20))))
    return bt, resident, vmem_limit


def transformer_encoder(x, params, num_heads, attn_mask=None):
    """Full TransformerEncoder forward as a single pallas_call.

    attn_mask is accepted for signature parity but unused: the reference encoder
    builds its blocks with do_cross_attn=False, so masks are never applied.
    """
    del attn_mask
    B, S, D = x.shape
    wqkv, wo, bo = params["wqkv"], params["wo"], params["bo"]
    wff, g_attn, g_ffn = params["wff"], params["g_attn"], params["g_ffn"]
    L = wqkv.shape[0]
    assert D % num_heads == 0
    hd = D // num_heads
    # TODO(synk): for production shapes pad D to a multiple of 128 (lane-dense
    # tiles) and Bt*S to a multiple of 8; demo shapes are left unpadded.

    # Fold the 1/sqrt(head_dim) attention scale into Wq; bf16 MXU operands
    # (halves weight DMA bytes; f32 accumulation happens in-kernel).
    wqkv_bf = wqkv.at[:, :, :D].multiply(1.0 / math.sqrt(hd)).astype(jnp.bfloat16)
    wo_bf = wo.astype(jnp.bfloat16)
    wff_bf = wff.astype(jnp.bfloat16)

    Bt, resident, vmem_limit = _plan(B, S, D, L, x.dtype.itemsize, x.dtype.itemsize)

    kernel = functools.partial(_encoder_kernel, num_heads=num_heads,
                               batch_tile=Bt, seq_len=S, resident_weights=resident)

    act_spec = pl.BlockSpec((Bt, S, D), lambda b, l: (b, 0, 0))
    if resident:
        # Full layer stack resident in VMEM: DMA'd once, indexed by layer in-kernel.
        wqkv_spec = pl.BlockSpec((L, D, 3 * D), lambda b, l: (0, 0, 0))
        mat_spec = pl.BlockSpec((L, D, D), lambda b, l: (0, 0, 0))
        vec_spec = pl.BlockSpec((L, 1, D), lambda b, l: (0, 0, 0))
    else:
        # Stream per-layer weights; BlockSpec double-buffering prefetches layer l+1.
        wqkv_spec = pl.BlockSpec((1, D, 3 * D), lambda b, l: (l, 0, 0))
        mat_spec = pl.BlockSpec((1, D, D), lambda b, l: (l, 0, 0))
        vec_spec = pl.BlockSpec((1, 1, D), lambda b, l: (l, 0, 0))

    return pl.pallas_call(
        kernel,
        out_shape=jax.ShapeDtypeStruct((B, S, D), x.dtype),
        grid=(B // Bt, L),
        in_specs=[act_spec, wqkv_spec, mat_spec, vec_spec, mat_spec, vec_spec, vec_spec],
        out_specs=act_spec,
        scratch_shapes=[pltpu.VMEM((Bt * S, D), jnp.float32)],   # resident residual stream
        compiler_params=pltpu.CompilerParams(
            dimension_semantics=("parallel", "arbitrary"),       # batch parallel, layers sequential
            vmem_limit_bytes=vmem_limit,
        ),
    )(x, wqkv_bf, wo_bf, bo, wff_bf, g_attn, g_ffn)


def init_encoder_params(key, d_in, d_out, n_layers):
    """Deterministic small random init, layer-stacked (L, ...) arrays.

    Linear weights are stored pre-transposed as (d_in, d_out); Q/K/V are fused
    as [Wq | Wk | Wv] along the output dim (qkv_bias=False in the reference).
    """
    assert d_in == d_out, "residual connections require d_in == d_out"
    ks = jax.random.split(key, 4)
    s_in = 1.0 / math.sqrt(d_in)
    s_out = 1.0 / math.sqrt(d_out)
    wqkv = jax.random.uniform(ks[0], (n_layers, d_in, 3 * d_out), jnp.float32, -s_in, s_in)
    wo = jax.random.uniform(ks[1], (n_layers, d_out, d_out), jnp.float32, -s_out, s_out)
    bo = jax.random.uniform(ks[2], (n_layers, 1, d_out), jnp.float32, -s_out, s_out)
    wff = jax.random.uniform(ks[3], (n_layers, d_out, d_out), jnp.float32, -s_out, s_out)
    g_attn = jnp.ones((n_layers, 1, d_out), jnp.float32)   # RMSNorm weights init to 1
    g_ffn = jnp.ones((n_layers, 1, d_out), jnp.float32)
    return {"wqkv": wqkv, "wo": wo, "bo": bo, "wff": wff,
            "g_attn": g_attn, "g_ffn": g_ffn}


if __name__ == "__main__":
    B, S = 2, 8
    d_model = 32
    num_heads = 4
    n_layers = 2

    key = jax.random.PRNGKey(0)
    kx, kp = jax.random.split(key)
    x = jax.random.normal(kx, (B, S, d_model), jnp.float32)
    attn_mask = jnp.ones((B, S), jnp.float32)   # unused (do_cross_attn=False)

    params = init_encoder_params(kp, d_model, d_model, n_layers)

    encoder = jax.jit(functools.partial(transformer_encoder, num_heads=num_heads))
    out = encoder(x, params, attn_mask=attn_mask)
    out = jax.block_until_ready(out)

    assert out.shape == (B, S, d_model)
    assert bool(jnp.all(jnp.isfinite(out)))
    print("KERNEL_OK")
</pallas_src>

<mosaic_0001>
module attributes {stable_mosaic.version = 11 : i64} {
  func.func @_encoder_kernel(%arg0: i32, %arg1: i32, %arg2: memref<1x8x32xf32, #tpu.memory_space<vmem>>, %arg3: memref<2x32x96xbf16, #tpu.memory_space<vmem>>, %arg4: memref<2x32x32xbf16, #tpu.memory_space<vmem>>, %arg5: memref<2x1x32xf32, #tpu.memory_space<vmem>>, %arg6: memref<2x32x32xbf16, #tpu.memory_space<vmem>>, %arg7: memref<2x1x32xf32, #tpu.memory_space<vmem>>, %arg8: memref<2x1x32xf32, #tpu.memory_space<vmem>>, %arg9: memref<1x8x32xf32, #tpu.memory_space<vmem>>, %arg10: memref<8x32xf32, #tpu.memory_space<vmem>>) attributes {dimension_semantics = [#tpu.dimension_semantics<parallel>, #tpu.dimension_semantics<arbitrary>], iteration_bounds = array<i64: 2, 2>, scalar_prefetch = 0 : i64, scratch_operands = 1 : i64, tpu.core_type = #tpu.core_type<tc>, window_params = [{transform_indices = @transform_0, window_bounds = array<i64: 1, 8, 32>}, {pipeline_mode = #tpu.pipeline_mode<synchronous>, transform_indices = @transform_1, window_bounds = array<i64: 2, 32, 96>}, {pipeline_mode = #tpu.pipeline_mode<synchronous>, transform_indices = @transform_2, window_bounds = array<i64: 2, 32, 32>}, {pipeline_mode = #tpu.pipeline_mode<synchronous>, transform_indices = @transform_3, window_bounds = array<i64: 2, 1, 32>}, {pipeline_mode = #tpu.pipeline_mode<synchronous>, transform_indices = @transform_4, window_bounds = array<i64: 2, 32, 32>}, {pipeline_mode = #tpu.pipeline_mode<synchronous>, transform_indices = @transform_5, window_bounds = array<i64: 2, 1, 32>}, {pipeline_mode = #tpu.pipeline_mode<synchronous>, transform_indices = @transform_6, window_bounds = array<i64: 2, 1, 32>}, {transform_indices = @transform_7, window_bounds = array<i64: 1, 8, 32>}]} {
    %c0_i32 = arith.constant 0 : i32
    %0 = arith.cmpi eq, %arg1, %c0_i32 : i32
    %1 = arith.extui %0 : i1 to i32
    %c0_i32_0 = arith.constant 0 : i32
    %2 = arith.cmpi ne, %1, %c0_i32_0 : i32
    scf.if %2 {
      %c0_48 = arith.constant 0 : index
      %c0_49 = arith.constant 0 : index
      %c0_50 = arith.constant 0 : index
      %141 = vector.load %arg2[%c0_48, %c0_49, %c0_50] : memref<1x8x32xf32, #tpu.memory_space<vmem>>, vector<1x8x32xf32>
      %142 = vector.shape_cast %141 : vector<1x8x32xf32> to vector<8x32xf32>
      %c0_51 = arith.constant 0 : index
      %c0_52 = arith.constant 0 : index
      %143 = vector.load %arg10[%c0_51, %c0_52] : memref<8x32xf32, #tpu.memory_space<vmem>>, vector<8x32xf32>
      tpu.vector_store %arg10[%c0_51, %c0_52], %142 {strides = array<i32>} : memref<8x32xf32, #tpu.memory_space<vmem>>, vector<8x32xf32>,
    } else {
    }
    %c0 = arith.constant 0 : index
    %c0_1 = arith.constant 0 : index
    %3 = vector.load %arg10[%c0, %c0_1] : memref<8x32xf32, #tpu.memory_space<vmem>>, vector<8x32xf32>
    %4 = arith.index_cast %arg1 : i32 to index
    %c0_2 = arith.constant 0 : index
    %c0_3 = arith.constant 0 : index
    %5 = vector.load %arg3[%4, %c0_2, %c0_3] : memref<2x32x96xbf16, #tpu.memory_space<vmem>>, vector<1x32x96xbf16>
    %6 = vector.shape_cast %5 : vector<1x32x96xbf16> to vector<32x96xbf16>
    %7 = arith.index_cast %arg1 : i32 to index
    %c0_4 = arith.constant 0 : index
    %c0_5 = arith.constant 0 : index
    %8 = vector.load %arg4[%7, %c0_4, %c0_5] : memref<2x32x32xbf16, #tpu.memory_space<vmem>>, vector<1x32x32xbf16>
    %9 = vector.shape_cast %8 : vector<1x32x32xbf16> to vector<32x32xbf16>
    %10 = arith.index_cast %arg1 : i32 to index
    %c0_6 = arith.constant 0 : index
    %c0_7 = arith.constant 0 : index
    %11 = vector.load %arg6[%10, %c0_6, %c0_7] : memref<2x32x32xbf16, #tpu.memory_space<vmem>>, vector<1x32x32xbf16>
    %12 = vector.shape_cast %11 : vector<1x32x32xbf16> to vector<32x32xbf16>
    %13 = arith.index_cast %arg1 : i32 to index
    %c0_8 = arith.constant 0 : index
    %c0_9 = arith.constant 0 : index
    %14 = vector.load %arg5[%13, %c0_8, %c0_9] : memref<2x1x32xf32, #tpu.memory_space<vmem>>, vector<1x1x32xf32>
    %15 = vector.shape_cast %14 : vector<1x1x32xf32> to vector<1x32xf32>
    %16 = arith.index_cast %arg1 : i32 to index
    %c0_10 = arith.constant 0 : index
    %c0_11 = arith.constant 0 : index
    %17 = vector.load %arg7[%16, %c0_10, %c0_11] : memref<2x1x32xf32, #tpu.memory_space<vmem>>, vector<1x1x32xf32>
    %18 = vector.shape_cast %17 : vector<1x1x32xf32> to vector<1x32xf32>
    %19 = arith.index_cast %arg1 : i32 to index
    %c0_12 = arith.constant 0 : index
    %c0_13 = arith.constant 0 : index
    %20 = vector.load %arg8[%19, %c0_12, %c0_13] : memref<2x1x32xf32, #tpu.memory_space<vmem>>, vector<1x1x32xf32>
    %21 = vector.shape_cast %20 : vector<1x1x32xf32> to vector<1x32xf32>
    %22 = arith.truncf %3 : vector<8x32xf32> to vector<8x32xbf16>
    %cst = arith.constant dense<0.000000e+00> : vector<8x96xf32>
    %23 = tpu.matmul %22, %6, %cst {dimension_numbers = #tpu.dot_dimension_numbers<[1], [0], [0], [1], [0, 0, 1, 1], [], []>} : vector<8x32xbf16>, vector<32x96xbf16>, vector<8x96xf32> -> vector<8x96xf32>
    %24 = arith.truncf %23 : vector<8x96xf32> to vector<8x96xbf16>
    %25 = vector.shape_cast %15 : vector<1x32xf32> to vector<1x32xf32>
    %26 = vector.broadcast %25 : vector<1x32xf32> to vector<8x32xf32>
    %27 = vector.extract_strided_slice %24 {offsets = [0, 0], sizes = [8, 8], strides = [1, 1]} : vector<8x96xbf16> to vector<8x8xbf16>
    %28 = vector.extract_strided_slice %24 {offsets = [0, 32], sizes = [8, 8], strides = [1, 1]} : vector<8x96xbf16> to vector<8x8xbf16>
    %29 = vector.extract_strided_slice %24 {offsets = [0, 64], sizes = [8, 8], strides = [1, 1]} : vector<8x96xbf16> to vector<8x8xbf16>
    %cst_14 = arith.constant dense<0.000000e+00> : vector<8x8xf32>
    %30 = tpu.matmul %27, %28, %cst_14 {dimension_numbers = #tpu.dot_dimension_numbers<[1], [1], [0], [0], [0, 0, 1, 0], [], []>} : vector<8x8xbf16>, vector<8x8xbf16>, vector<8x8xf32> -> vector<8x8xf32>
    %cst_15 = arith.constant dense<0xFF800000> : vector<8xf32>
    %31 = vector.multi_reduction <maximumf>, %30, %cst_15 [1] : vector<8x8xf32> to vector<8xf32>
    %32 = vector.shape_cast %31 : vector<8xf32> to vector<8x1xf32>
    %33 = vector.broadcast %32 : vector<8x1xf32> to vector<8x8xf32>
    %34 = arith.subf %30, %33 : vector<8x8xf32>
    %35 = math.exp %34 : vector<8x8xf32>
    %cst_16 = arith.constant dense<0.000000e+00> : vector<8xf32>
    %36 = vector.multi_reduction <add>, %35, %cst_16 [1] : vector<8x8xf32> to vector<8xf32>
    %37 = vector.shape_cast %36 : vector<8xf32> to vector<8x1xf32>
    %38 = tpu.reciprocal %37 {approx = true} : vector<8x1xf32> -> vector<8x1xf32>
    %39 = vector.broadcast %38 : vector<8x1xf32> to vector<8x8xf32>
    %40 = arith.mulf %35, %39 : vector<8x8xf32>
    %41 = arith.truncf %40 : vector<8x8xf32> to vector<8x8xbf16>
    %cst_17 = arith.constant dense<0.000000e+00> : vector<8x8xf32>
    %42 = tpu.matmul %41, %29, %cst_17 {dimension_numbers = #tpu.dot_dimension_numbers<[1], [0], [0], [1], [0, 0, 1, 1], [], []>} : vector<8x8xbf16>, vector<8x8xbf16>, vector<8x8xf32> -> vector<8x8xf32>
    %43 = vector.extract_strided_slice %9 {offsets = [0, 0], sizes = [8, 32], strides = [1, 1]} : vector<32x32xbf16> to vector<8x32xbf16>
    %44 = arith.truncf %42 : vector<8x8xf32> to vector<8x8xbf16>
    %cst_18 = arith.constant dense<0.000000e+00> : vector<8x32xf32>
    %45 = tpu.matmul %44, %43, %cst_18 {dimension_numbers = #tpu.dot_dimension_numbers<[1], [0], [0], [1], [0, 0, 1, 1], [], []>} : vector<8x8xbf16>, vector<8x32xbf16>, vector<8x32xf32> -> vector<8x32xf32>
    %46 = arith.addf %26, %45 : vector<8x32xf32>
    %47 = vector.extract_strided_slice %24 {offsets = [0, 8], sizes = [8, 8], strides = [1, 1]} : vector<8x96xbf16> to vector<8x8xbf16>
    %48 = vector.extract_strided_slice %24 {offsets = [0, 40], sizes = [8, 8], strides = [1, 1]} : vector<8x96xbf16> to vector<8x8xbf16>
    %49 = vector.extract_strided_slice %24 {offsets = [0, 72], sizes = [8, 8], strides = [1, 1]} : vector<8x96xbf16> to vector<8x8xbf16>
    %cst_19 = arith.constant dense<0.000000e+00> : vector<8x8xf32>
    %50 = tpu.matmul %47, %48, %cst_19 {dimension_numbers = #tpu.dot_dimension_numbers<[1], [1], [0], [0], [0, 0, 1, 0], [], []>} : vector<8x8xbf16>, vector<8x8xbf16>, vector<8x8xf32> -> vector<8x8xf32>
    %cst_20 = arith.constant dense<0xFF800000> : vector<8xf32>
    %51 = vector.multi_reduction <maximumf>, %50, %cst_20 [1] : vector<8x8xf32> to vector<8xf32>
    %52 = vector.shape_cast %51 : vector<8xf32> to vector<8x1xf32>
    %53 = vector.broadcast %52 : vector<8x1xf32> to vector<8x8xf32>
    %54 = arith.subf %50, %53 : vector<8x8xf32>
    %55 = math.exp %54 : vector<8x8xf32>
    %cst_21 = arith.constant dense<0.000000e+00> : vector<8xf32>
    %56 = vector.multi_reduction <add>, %55, %cst_21 [1] : vector<8x8xf32> to vector<8xf32>
    %57 = vector.shape_cast %56 : vector<8xf32> to vector<8x1xf32>
    %58 = tpu.reciprocal %57 {approx = true} : vector<8x1xf32> -> vector<8x1xf32>
    %59 = vector.broadcast %58 : vector<8x1xf32> to vector<8x8xf32>
    %60 = arith.mulf %55, %59 : vector<8x8xf32>
    %61 = arith.truncf %60 : vector<8x8xf32> to vector<8x8xbf16>
    %cst_22 = arith.constant dense<0.000000e+00> : vector<8x8xf32>
    %62 = tpu.matmul %61, %49, %cst_22 {dimension_numbers = #tpu.dot_dimension_numbers<[1], [0], [0], [1], [0, 0, 1, 1], [], []>} : vector<8x8xbf16>, vector<8x8xbf16>, vector<8x8xf32> -> vector<8x8xf32>
    %63 = vector.extract_strided_slice %9 {offsets = [8, 0], sizes = [8, 32], strides = [1, 1]} : vector<32x32xbf16> to vector<8x32xbf16>
    %64 = arith.truncf %62 : vector<8x8xf32> to vector<8x8xbf16>
    %cst_23 = arith.constant dense<0.000000e+00> : vector<8x32xf32>
    %65 = tpu.matmul %64, %63, %cst_23 {dimension_numbers = #tpu.dot_dimension_numbers<[1], [0], [0], [1], [0, 0, 1, 1], [], []>} : vector<8x8xbf16>, vector<8x32xbf16>, vector<8x32xf32> -> vector<8x32xf32>
    %66 = arith.addf %46, %65 : vector<8x32xf32>
    %67 = vector.extract_strided_slice %24 {offsets = [0, 16], sizes = [8, 8], strides = [1, 1]} : vector<8x96xbf16> to vector<8x8xbf16>
    %68 = vector.extract_strided_slice %24 {offsets = [0, 48], sizes = [8, 8], strides = [1, 1]} : vector<8x96xbf16> to vector<8x8xbf16>
    %69 = vector.extract_strided_slice %24 {offsets = [0, 80], sizes = [8, 8], strides = [1, 1]} : vector<8x96xbf16> to vector<8x8xbf16>
    %cst_24 = arith.constant dense<0.000000e+00> : vector<8x8xf32>
    %70 = tpu.matmul %67, %68, %cst_24 {dimension_numbers = #tpu.dot_dimension_numbers<[1], [1], [0], [0], [0, 0, 1, 0], [], []>} : vector<8x8xbf16>, vector<8x8xbf16>, vector<8x8xf32> -> vector<8x8xf32>
    %cst_25 = arith.constant dense<0xFF800000> : vector<8xf32>
    %71 = vector.multi_reduction <maximumf>, %70, %cst_25 [1] : vector<8x8xf32> to vector<8xf32>
    %72 = vector.shape_cast %71 : vector<8xf32> to vector<8x1xf32>
    %73 = vector.broadcast %72 : vector<8x1xf32> to vector<8x8xf32>
    %74 = arith.subf %70, %73 : vector<8x8xf32>
    %75 = math.exp %74 : vector<8x8xf32>
    %cst_26 = arith.constant dense<0.000000e+00> : vector<8xf32>
    %76 = vector.multi_reduction <add>, %75, %cst_26 [1] : vector<8x8xf32> to vector<8xf32>
    %77 = vector.shape_cast %76 : vector<8xf32> to vector<8x1xf32>
    %78 = tpu.reciprocal %77 {approx = true} : vector<8x1xf32> -> vector<8x1xf32>
    %79 = vector.broadcast %78 : vector<8x1xf32> to vector<8x8xf32>
    %80 = arith.mulf %75, %79 : vector<8x8xf32>
    %81 = arith.truncf %80 : vector<8x8xf32> to vector<8x8xbf16>
    %cst_27 = arith.constant dense<0.000000e+00> : vector<8x8xf32>
    %82 = tpu.matmul %81, %69, %cst_27 {dimension_numbers = #tpu.dot_dimension_numbers<[1], [0], [0], [1], [0, 0, 1, 1], [], []>} : vector<8x8xbf16>, vector<8x8xbf16>, vector<8x8xf32> -> vector<8x8xf32>
    %83 = vector.extract_strided_slice %9 {offsets = [16, 0], sizes = [8, 32], strides = [1, 1]} : vector<32x32xbf16> to vector<8x32xbf16>
    %84 = arith.truncf %82 : vector<8x8xf32> to vector<8x8xbf16>
    %cst_28 = arith.constant dense<0.000000e+00> : vector<8x32xf32>
    %85 = tpu.matmul %84, %83, %cst_28 {dimension_numbers = #tpu.dot_dimension_numbers<[1], [0], [0], [1], [0, 0, 1, 1], [], []>} : vector<8x8xbf16>, vector<8x32xbf16>, vector<8x32xf32> -> vector<8x32xf32>
    %86 = arith.addf %66, %85 : vector<8x32xf32>
    %87 = vector.extract_strided_slice %24 {offsets = [0, 24], sizes = [8, 8], strides = [1, 1]} : vector<8x96xbf16> to vector<8x8xbf16>
    %88 = vector.extract_strided_slice %24 {offsets = [0, 56], sizes = [8, 8], strides = [1, 1]} : vector<8x96xbf16> to vector<8x8xbf16>
    %89 = vector.extract_strided_slice %24 {offsets = [0, 88], sizes = [8, 8], strides = [1, 1]} : vector<8x96xbf16> to vector<8x8xbf16>
    %cst_29 = arith.constant dense<0.000000e+00> : vector<8x8xf32>
    %90 = tpu.matmul %87, %88, %cst_29 {dimension_numbers = #tpu.dot_dimension_numbers<[1], [1], [0], [0], [0, 0, 1, 0], [], []>} : vector<8x8xbf16>, vector<8x8xbf16>, vector<8x8xf32> -> vector<8x8xf32>
    %cst_30 = arith.constant dense<0xFF800000> : vector<8xf32>
    %91 = vector.multi_reduction <maximumf>, %90, %cst_30 [1] : vector<8x8xf32> to vector<8xf32>
    %92 = vector.shape_cast %91 : vector<8xf32> to vector<8x1xf32>
    %93 = vector.broadcast %92 : vector<8x1xf32> to vector<8x8xf32>
    %94 = arith.subf %90, %93 : vector<8x8xf32>
    %95 = math.exp %94 : vector<8x8xf32>
    %cst_31 = arith.constant dense<0.000000e+00> : vector<8xf32>
    %96 = vector.multi_reduction <add>, %95, %cst_31 [1] : vector<8x8xf32> to vector<8xf32>
    %97 = vector.shape_cast %96 : vector<8xf32> to vector<8x1xf32>
    %98 = tpu.reciprocal %97 {approx = true} : vector<8x1xf32> -> vector<8x1xf32>
    %99 = vector.broadcast %98 : vector<8x1xf32> to vector<8x8xf32>
    %100 = arith.mulf %95, %99 : vector<8x8xf32>
    %101 = arith.truncf %100 : vector<8x8xf32> to vector<8x8xbf16>
    %cst_32 = arith.constant dense<0.000000e+00> : vector<8x8xf32>
    %102 = tpu.matmul %101, %89, %cst_32 {dimension_numbers = #tpu.dot_dimension_numbers<[1], [0], [0], [1], [0, 0, 1, 1], [], []>} : vector<8x8xbf16>, vector<8x8xbf16>, vector<8x8xf32> -> vector<8x8xf32>
    %103 = vector.extract_strided_slice %9 {offsets = [24, 0], sizes = [8, 32], strides = [1, 1]} : vector<32x32xbf16> to vector<8x32xbf16>
    %104 = arith.truncf %102 : vector<8x8xf32> to vector<8x8xbf16>
    %cst_33 = arith.constant dense<0.000000e+00> : vector<8x32xf32>
    %105 = tpu.matmul %104, %103, %cst_33 {dimension_numbers = #tpu.dot_dimension_numbers<[1], [0], [0], [1], [0, 0, 1, 1], [], []>} : vector<8x8xbf16>, vector<8x32xbf16>, vector<8x32xf32> -> vector<8x32xf32>
    %106 = arith.addf %86, %105 : vector<8x32xf32>
    %107 = arith.addf %3, %106 : vector<8x32xf32>
    %108 = arith.mulf %107, %107 : vector<8x32xf32>
    %cst_34 = arith.constant dense<0.000000e+00> : vector<8xf32>
    %109 = vector.multi_reduction <add>, %108, %cst_34 [1] : vector<8x32xf32> to vector<8xf32>
    %110 = vector.shape_cast %109 : vector<8xf32> to vector<8x1xf32>
    %cst_35 = arith.constant 3.200000e+01 : f32
    %111 = vector.broadcast %cst_35 : f32 to vector<8x1xf32>
    %112 = arith.divf %110, %111 : vector<8x1xf32>
    %cst_36 = arith.constant 9.99999997E-7 : f32
    %113 = vector.broadcast %cst_36 : f32 to vector<8x1xf32>
    %114 = arith.addf %112, %113 : vector<8x1xf32>
    %115 = math.rsqrt %114 : vector<8x1xf32>
    %116 = vector.broadcast %115 : vector<8x1xf32> to vector<8x32xf32>
    %117 = arith.mulf %107, %116 : vector<8x32xf32>
    %118 = vector.broadcast %18 : vector<1x32xf32> to vector<8x32xf32>
    %119 = arith.mulf %117, %118 : vector<8x32xf32>
    %c0_37 = arith.constant 0 : index
    %c0_38 = arith.constant 0 : index
    %120 = vector.load %arg10[%c0_37, %c0_38] : memref<8x32xf32, #tpu.memory_space<vmem>>, vector<8x32xf32>
    tpu.vector_store %arg10[%c0_37, %c0_38], %119 {strides = array<i32>} : memref<8x32xf32, #tpu.memory_space<vmem>>, vector<8x32xf32>,
    %c0_39 = arith.constant 0 : index
    %c0_40 = arith.constant 0 : index
    %121 = vector.load %arg10[%c0_39, %c0_40] : memref<8x32xf32, #tpu.memory_space<vmem>>, vector<8x32xf32>
    %122 = arith.truncf %121 : vector<8x32xf32> to vector<8x32xbf16>
    %cst_41 = arith.constant dense<0.000000e+00> : vector<8x32xf32>
    %123 = tpu.matmul %122, %12, %cst_41 {dimension_numbers = #tpu.dot_dimension_numbers<[1], [0], [0], [1], [0, 0, 1, 1], [], []>} : vector<8x32xbf16>, vector<32x32xbf16>, vector<8x32xf32> -> vector<8x32xf32>
    %124 = arith.addf %121, %123 : vector<8x32xf32>
    %125 = arith.mulf %124, %124 : vector<8x32xf32>
    %cst_42 = arith.constant dense<0.000000e+00> : vector<8xf32>
    %126 = vector.multi_reduction <add>, %125, %cst_42 [1] : vector<8x32xf32> to vector<8xf32>
    %127 = vector.shape_cast %126 : vector<8xf32> to vector<8x1xf32>
    %cst_43 = arith.constant 3.200000e+01 : f32
    %128 = vector.broadcast %cst_43 : f32 to vector<8x1xf32>
    %129 = arith.divf %127, %128 : vector<8x1xf32>
    %cst_44 = arith.constant 9.99999997E-7 : f32
    %130 = vector.broadcast %cst_44 : f32 to vector<8x1xf32>
    %131 = arith.addf %129, %130 : vector<8x1xf32>
    %132 = math.rsqrt %131 : vector<8x1xf32>
    %133 = vector.broadcast %132 : vector<8x1xf32> to vector<8x32xf32>
    %134 = arith.mulf %124, %133 : vector<8x32xf32>
    %135 = vector.broadcast %21 : vector<1x32xf32> to vector<8x32xf32>
    %136 = arith.mulf %134, %135 : vector<8x32xf32>
    %c0_45 = arith.constant 0 : index
    %c0_46 = arith.constant 0 : index
    %137 = vector.load %arg10[%c0_45, %c0_46] : memref<8x32xf32, #tpu.memory_space<vmem>>, vector<8x32xf32>
    tpu.vector_store %arg10[%c0_45, %c0_46], %136 {strides = array<i32>} : memref<8x32xf32, #tpu.memory_space<vmem>>, vector<8x32xf32>,
    %c1_i32 = arith.constant 1 : i32
    %138 = arith.cmpi eq, %arg1, %c1_i32 : i32
    %139 = arith.extui %138 : i1 to i32
    %c0_i32_47 = arith.constant 0 : i32
    %140 = arith.cmpi ne, %139, %c0_i32_47 : i32
    scf.if %140 {
      %141 = vector.shape_cast %136 : vector<8x32xf32> to vector<1x8x32xf32>
      %c0_48 = arith.constant 0 : index
      %c0_49 = arith.constant 0 : index
      %c0_50 = arith.constant 0 : index
      %142 = vector.load %arg9[%c0_48, %c0_49, %c0_50] : memref<1x8x32xf32, #tpu.memory_space<vmem>>, vector<1x8x32xf32>
      tpu.vector_store %arg9[%c0_48, %c0_49, %c0_50], %141 {strides = array<i32>} : memref<1x8x32xf32, #tpu.memory_space<vmem>>, vector<1x8x32xf32>,
    } else {
    }
    return
  }
  func.func @transform_0(%arg0: i32, %arg1: i32) -> (i32, i32, i32) {
    %c0_i32 = arith.constant 0 : i32
    %c0_i32_0 = arith.constant 0 : i32
    %c0_i32_1 = arith.constant 0 : i32
    return %arg0, %c0_i32, %c0_i32_0 : i32, i32, i32
  }
  func.func @transform_1(%arg0: i32, %arg1: i32) -> (i32, i32, i32) {
    %c0_i32 = arith.constant 0 : i32
    %c0_i32_0 = arith.constant 0 : i32
    %c0_i32_1 = arith.constant 0 : i32
    %c0_i32_2 = arith.constant 0 : i32
    return %c0_i32, %c0_i32_0, %c0_i32_1 : i32, i32, i32
  }
  func.func @transform_2(%arg0: i32, %arg1: i32) -> (i32, i32, i32) {
    %c0_i32 = arith.constant 0 : i32
    %c0_i32_0 = arith.constant 0 : i32
    %c0_i32_1 = arith.constant 0 : i32
    %c0_i32_2 = arith.constant 0 : i32
    return %c0_i32, %c0_i32_0, %c0_i32_1 : i32, i32, i32
  }
  func.func @transform_3(%arg0: i32, %arg1: i32) -> (i32, i32, i32) {
    %c0_i32 = arith.constant 0 : i32
    %c0_i32_0 = arith.constant 0 : i32
    %c0_i32_1 = arith.constant 0 : i32
    %c0_i32_2 = arith.constant 0 : i32
    return %c0_i32, %c0_i32_0, %c0_i32_1 : i32, i32, i32
  }
  func.func @transform_4(%arg0: i32, %arg1: i32) -> (i32, i32, i32) {
    %c0_i32 = arith.constant 0 : i32
    %c0_i32_0 = arith.constant 0 : i32
    %c0_i32_1 = arith.constant 0 : i32
    %c0_i32_2 = arith.constant 0 : i32
    return %c0_i32, %c0_i32_0, %c0_i32_1 : i32, i32, i32
  }
  func.func @transform_5(%arg0: i32, %arg1: i32) -> (i32, i32, i32) {
    %c0_i32 = arith.constant 0 : i32
    %c0_i32_0 = arith.constant 0 : i32
    %c0_i32_1 = arith.constant 0 : i32
    %c0_i32_2 = arith.constant 0 : i32
    return %c0_i32, %c0_i32_0, %c0_i32_1 : i32, i32, i32
  }
  func.func @transform_6(%arg0: i32, %arg1: i32) -> (i32, i32, i32) {
    %c0_i32 = arith.constant 0 : i32
    %c0_i32_0 = arith.constant 0 : i32
    %c0_i32_1 = arith.constant 0 : i32
    %c0_i32_2 = arith.constant 0 : i32
    return %c0_i32, %c0_i32_0, %c0_i32_1 : i32, i32, i32
  }
  func.func @transform_7(%arg0: i32, %arg1: i32) -> (i32, i32, i32) {
    %c0_i32 = arith.constant 0 : i32
    %c0_i32_0 = arith.constant 0 : i32
    %c0_i32_1 = arith.constant 0 : i32
    return %arg0, %c0_i32, %c0_i32_0 : i32, i32, i32
  }
}

</mosaic_0001>

<llo_original>
// kernel: transformer_encoder.1
$region0: #{transformer_encoder.1}
  #allocation0 [shape = 'u32[]', space=smem, size = 0x4, offset = 0x4, fixed_abs, tag = 'smem constant byte address 0x4 - core index']
  #allocation1 [shape = 'u32[144,128]{1,0:T(1,128)}', space=vmem, size = 0x12000, scoped, tag = 'internal scratch']
  #allocation2 [shape = 'f32[8,32]{1,0:T(8,128)}', space=vmem, size = 0x1000, scoped, tag = 'scratch operand']
  %s0 = inlined_call_operand.vmem [shape: f32[2,8,32], index: 0, kind: input, shape index: {}]
  %s1 = inlined_call_operand.vmem [shape: bf16[2,32,96], index: 1, kind: input, shape index: {}]
  %s2 = inlined_call_operand.vmem [shape: bf16[2,32,32], index: 2, kind: input, shape index: {}]
  %s3 = inlined_call_operand.vmem [shape: f32[2,1,32], index: 3, kind: input, shape index: {}]
  %s4 = inlined_call_operand.vmem [shape: bf16[2,32,32], index: 4, kind: input, shape index: {}]
  %s5 = inlined_call_operand.vmem [shape: f32[2,1,32], index: 5, kind: input, shape index: {}]
  %s6 = inlined_call_operand.vmem [shape: f32[2,1,32], index: 6, kind: input, shape index: {}]
  %s7 = inlined_call_operand.hbm [shape: f32[2,8,32], index: 7, kind: output, shape index: {}]
  %s8 = sld [smem:[#allocation0]]
  $region69: #{transformer_encoder.1} parent=0
    _
  %s10 = ssub.s32 1, %s8
  %s11 = scalar_select 0, %s10, %s8
  $region1: #{transformer_encoder.1} parent=0
    #allocation3 [shape = 'u8[8192]{0}', space=vmem, size = 0x2000, scoped, tag = 'output window, operand 0']
    #allocation4 [shape = 's32[2]{0}', space=sflag, size = 0x8, scoped, tag = 'scoped memory for transformer_encoder.1']
    %12 = vsyncpa [#allocation4], 0
    %s13 = scalar_lea.sflag [#allocation4], 1
    %14 = vsyncpa %s13, 0
    loop: start=0, step=1, limit=6
    $region2: #{transformer_encoder.1} parent=1 // loop_pre_header
      _
    $region3: #{transformer_encoder.1} parent=1 // loop_header
      %s16 = sphi 0, %s20
      %p17 = scmp.ge.s32.totalorder %s16, 6
      %s23 = sphi 0, %s35
      %s24 = sphi 0, %s31
      %s25 = sphi 0, %s23
      %s26 = sphi 0, %s24
      %s27 = sphi 0, %s25
      %s28 = sphi 0, %s26
      %s38 = sphi 0, %s40
      %s41 = sphi 0, %s38
      %s42 = sphi 0, %s41
      %s58 = sphi 0, %s42
      %s62 = sphi 0, %s62
      %s64 = sphi 0, %s62
      %s65 = sphi 0, %s64
      %s79 = sphi 0, %s65
      %s83 = sphi 0, %s83
      %s85 = sphi 0, %s83
      %s86 = sphi 0, %s85
      %s100 = sphi 0, %s86
      %s104 = sphi 0, %s104
      %s106 = sphi 0, %s104
      %s107 = sphi 0, %s106
      %s121 = sphi 0, %s107
      %s125 = sphi 0, %s125
      %s127 = sphi 0, %s125
      %s128 = sphi 0, %s127
      %s142 = sphi 0, %s128
      %s146 = sphi 0, %s146
      %s148 = sphi 0, %s146
      %s149 = sphi 0, %s148
      %s163 = sphi 0, %s149
      %s167 = sphi 0, %s167
      %s169 = sphi 0, %s167
      %s170 = sphi 0, %s169
      %s184 = sphi 0, %s170
      %s190 = sphi 0, %s192
      %s193 = sphi 0, %s190
      %s194 = sphi 0, %s193
      %s210 = sphi 0, %s194
    $region4: #{transformer_encoder.1} parent=1 // loop_header_branch
      %19 = sbr.rel (%p17) target = $region8
    $region5: #{transformer_encoder.1} parent=1 // loop_body
      %s21 = ssub.s32 %s16, 1
      %s22 = ssub.s32 %s16, 2
      %s29 = sadd.s32 1, %s24
      %p30 = scmp.ge.s32.totalorder %s29, 2
      %s31 = scalar_select %p30, 0, %s29
      %s32 = sadd.s32 1, %s23
      %s33 = scalar_select %p30, %s32, %s23
      %p34 = scmp.ge.s32.totalorder %s33, 2
      %s35 = scalar_select %p34, 0, %s33
      %s36 = ssub.s32 %s23, %s35
      %p37 = scmp.eq.s32.totalorder %s36, 0
      %s39 = sadd.s32 %s38, 1
      %s40 = scalar_select %p37, %s38, %s39
      %p43 = pneg %p37
      %p44 = scmp.eq.s32.totalorder %s16, 3
      %p45 = por %p43, %p44
      %p46 = scmp.ne.s32.totalorder %s38, %s41
      %p47 = scmp.eq.s32.totalorder %s16, 0
      %p48 = por %p46, %p47
      %p49 = scmp.ne.s32.totalorder %s38, %s41
      %p50 = scmp.eq.s32.totalorder %s21, 3
      %p51 = por %p49, %p50
      %p52 = scmp.ne.s32.totalorder %s41, %s42
      %p53 = scmp.eq.s32.totalorder %s21, 0
      %p54 = por %p52, %p53
      %p55 = scmp.ne.s32.totalorder %s41, %s42
      %p56 = scmp.eq.s32.totalorder %s22, 3
      %p57 = por %p55, %p56
      %p59 = scmp.ne.s32.totalorder %s42, %s58
      %p60 = scmp.eq.s32.totalorder %s22, 0
      %p61 = por %p59, %p60
      %s63 = sadd.s32 %s62, 1
      %p66 = scmp.eq.s32.totalorder %s16, 3
      %p67 = scmp.ne.s32.totalorder %s62, %s64
      %p68 = scmp.eq.s32.totalorder %s16, 0
      %p69 = por %p67, %p68
      %p70 = scmp.ne.s32.totalorder %s62, %s64
      %p71 = scmp.eq.s32.totalorder %s21, 3
      %p72 = por %p70, %p71
      %p73 = scmp.ne.s32.totalorder %s64, %s65
      %p74 = scmp.eq.s32.totalorder %s21, 0
      %p75 = por %p73, %p74
      %p76 = scmp.ne.s32.totalorder %s64, %s65
      %p77 = scmp.eq.s32.totalorder %s22, 3
      %p78 = por %p76, %p77
      %p80 = scmp.ne.s32.totalorder %s65, %s79
      %p81 = scmp.eq.s32.totalorder %s22, 0
      %p82 = por %p80, %p81
      %s84 = sadd.s32 %s83, 1
      %p87 = scmp.eq.s32.totalorder %s16, 3
      %p88 = scmp.ne.s32.totalorder %s83, %s85
      %p89 = scmp.eq.s32.totalorder %s16, 0
      %p90 = por %p88, %p89
      %p91 = scmp.ne.s32.totalorder %s83, %s85
      %p92 = scmp.eq.s32.totalorder %s21, 3
      %p93 = por %p91, %p92
      %p94 = scmp.ne.s32.totalorder %s85, %s86
      %p95 = scmp.eq.s32.totalorder %s21, 0
      %p96 = por %p94, %p95
      %p97 = scmp.ne.s32.totalorder %s85, %s86
      %p98 = scmp.eq.s32.totalorder %s22, 3
      %p99 = por %p97, %p98
      %p101 = scmp.ne.s32.totalorder %s86, %s100
      %p102 = scmp.eq.s32.totalorder %s22, 0
      %p103 = por %p101, %p102
      %s105 = sadd.s32 %s104, 1
      %p108 = scmp.eq.s32.totalorder %s16, 3
      %p109 = scmp.ne.s32.totalorder %s104, %s106
      %p110 = scmp.eq.s32.totalorder %s16, 0
      %p111 = por %p109, %p110
      %p112 = scmp.ne.s32.totalorder %s104, %s106
      %p113 = scmp.eq.s32.totalorder %s21, 3
      %p114 = por %p112, %p113
      %p115 = scmp.ne.s32.totalorder %s106, %s107
      %p116 = scmp.eq.s32.totalorder %s21, 0
      %p117 = por %p115, %p116
      %p118 = scmp.ne.s32.totalorder %s106, %s107
      %p119 = scmp.eq.s32.totalorder %s22, 3
      %p120 = por %p118, %p119
      %p122 = scmp.ne.s32.totalorder %s107, %s121
      %p123 = scmp.eq.s32.totalorder %s22, 0
      %p124 = por %p122, %p123
      %s126 = sadd.s32 %s125, 1
      %p129 = scmp.eq.s32.totalorder %s16, 3
      %p130 = scmp.ne.s32.totalorder %s125, %s127
      %p131 = scmp.eq.s32.totalorder %s16, 0
      %p132 = por %p130, %p131
      %p133 = scmp.ne.s32.totalorder %s125, %s127
      %p134 = scmp.eq.s32.totalorder %s21, 3
      %p135 = por %p133, %p134
      %p136 = scmp.ne.s32.totalorder %s127, %s128
      %p137 = scmp.eq.s32.totalorder %s21, 0
      %p138 = por %p136, %p137
      %p139 = scmp.ne.s32.totalorder %s127, %s128
      %p140 = scmp.eq.s32.totalorder %s22, 3
      %p141 = por %p139, %p140
      %p143 = scmp.ne.s32.totalorder %s128, %s142
      %p144 = scmp.eq.s32.totalorder %s22, 0
      %p145 = por %p143, %p144
      %s147 = sadd.s32 %s146, 1
      %p150 = scmp.eq.s32.totalorder %s16, 3
      %p151 = scmp.ne.s32.totalorder %s146, %s148
      %p152 = scmp.eq.s32.totalorder %s16, 0
      %p153 = por %p151, %p152
      %p154 = scmp.ne.s32.totalorder %s146, %s148
      %p155 = scmp.eq.s32.totalorder %s21, 3
      %p156 = por %p154, %p155
      %p157 = scmp.ne.s32.totalorder %s148, %s149
      %p158 = scmp.eq.s32.totalorder %s21, 0
      %p159 = por %p157, %p158
      %p160 = scmp.ne.s32.totalorder %s148, %s149
      %p161 = scmp.eq.s32.totalorder %s22, 3
      %p162 = por %p160, %p161
      %p164 = scmp.ne.s32.totalorder %s149, %s163
      %p165 = scmp.eq.s32.totalorder %s22, 0
      %p166 = por %p164, %p165
      %s168 = sadd.s32 %s167, 1
      %p171 = scmp.eq.s32.totalorder %s16, 3
      %p172 = scmp.ne.s32.totalorder %s167, %s169
      %p173 = scmp.eq.s32.totalorder %s16, 0
      %p174 = por %p172, %p173
      %p175 = scmp.ne.s32.totalorder %s167, %s169
      %p176 = scmp.eq.s32.totalorder %s21, 3
      %p177 = por %p175, %p176
      %p178 = scmp.ne.s32.totalorder %s169, %s170
      %p179 = scmp.eq.s32.totalorder %s21, 0
      %p180 = por %p178, %p179
      %p181 = scmp.ne.s32.totalorder %s169, %s170
      %p182 = scmp.eq.s32.totalorder %s22, 3
      %p183 = por %p181, %p182
      %p185 = scmp.ne.s32.totalorder %s170, %s184
      %p186 = scmp.eq.s32.totalorder %s22, 0
      %p187 = por %p185, %p186
      %s188 = ssub.s32 %s23, %s35
      %p189 = scmp.eq.s32.totalorder %s188, 0
      %s191 = sadd.s32 %s190, 1
      %s192 = scalar_select %p189, %s190, %s191
      %p195 = pneg %p189
      %p196 = scmp.eq.s32.totalorder %s16, 3
      %p197 = por %p195, %p196
      %p198 = scmp.ne.s32.totalorder %s190, %s193
      %p199 = scmp.eq.s32.totalorder %s16, 0
      %p200 = por %p198, %p199
      %p201 = scmp.ne.s32.totalorder %s190, %s193
      %p202 = scmp.eq.s32.totalorder %s21, 3
      %p203 = por %p201, %p202
      %p204 = scmp.ne.s32.totalorder %s193, %s194
      %p205 = scmp.eq.s32.totalorder %s21, 0
      %p206 = por %p204, %p205
      %p207 = scmp.ne.s32.totalorder %s193, %s194
      %p208 = scmp.eq.s32.totalorder %s22, 3
      %p209 = por %p207, %p208
      %p211 = scmp.ne.s32.totalorder %s194, %s210
      %p212 = scmp.eq.s32.totalorder %s22, 0
      %p213 = por %p211, %p212
      %p214 = scmp.le.s32.totalorder 1, %s16
      %p215 = scmp.lt.s32.totalorder %s16, 5
      %p216 = pnand %p214, %p215
      %p217 = pneg %p216
      // Predicated region
      $region9: #{transformer_encoder.1} parent=5 // pred_check
        _
      $region10: #{transformer_encoder.1} parent=5 // pred_check_branch
        %219 = sbr.rel (%p216) target = $region12
      $region11: #{transformer_encoder.1} parent=5 // pred_region
        %s220 = ssub.s32 %s16, 1
        // Predicated region
        $region13: #{transformer_encoder.1} parent=11 // pred_check
          %p221 = pneg %p75
        $region14: #{transformer_encoder.1} parent=11 // pred_check_branch
          %223 = sbr.rel (%p221) target = $region16
        $region15: #{transformer_encoder.1} parent=11 // pred_region
          _
        $region16: #{transformer_encoder.1} parent=11 // pred_fallthru
          _
        // Predicated region
        $region17: #{transformer_encoder.1} parent=11 // pred_check
          %p224 = pneg %p96
        $region18: #{transformer_encoder.1} parent=11 // pred_check_branch
          %226 = sbr.rel (%p224) target = $region20
        $region19: #{transformer_encoder.1} parent=11 // pred_region
          _
        $region20: #{transformer_encoder.1} parent=11 // pred_fallthru
          _
        // Predicated region
        $region21: #{transformer_encoder.1} parent=11 // pred_check
          %p227 = pneg %p117
        $region22: #{transformer_encoder.1} parent=11 // pred_check_branch
          %229 = sbr.rel (%p227) target = $region24
        $region23: #{transformer_encoder.1} parent=11 // pred_region
          _
        $region24: #{transformer_encoder.1} parent=11 // pred_fallthru
          _
        // Predicated region
        $region25: #{transformer_encoder.1} parent=11 // pred_check
          %p230 = pneg %p138
        $region26: #{transformer_encoder.1} parent=11 // pred_check_branch
          %232 = sbr.rel (%p230) target = $region28
        $region27: #{transformer_encoder.1} parent=11 // pred_region
          _
        $region28: #{transformer_encoder.1} parent=11 // pred_fallthru
          _
        // Predicated region
        $region29: #{transformer_encoder.1} parent=11 // pred_check
          %p233 = pneg %p159
        $region30: #{transformer_encoder.1} parent=11 // pred_check_branch
          %235 = sbr.rel (%p233) target = $region32
        $region31: #{transformer_encoder.1} parent=11 // pred_region
          _
        $region32: #{transformer_encoder.1} parent=11 // pred_fallthru
          _
        // Predicated region
        $region33: #{transformer_encoder.1} parent=11 // pred_check
          %p236 = pneg %p180
        $region34: #{transformer_encoder.1} parent=11 // pred_check_branch
          %238 = sbr.rel (%p236) target = $region36
        $region35: #{transformer_encoder.1} parent=11 // pred_region
          _
        $region36: #{transformer_encoder.1} parent=11 // pred_fallthru
          _
      $region12: #{transformer_encoder.1} parent=5 // pred_fallthru
        _
      %p239 = scmp.lt.s32.totalorder %s16, 4
      // Predicated region
      $region37: #{transformer_encoder.1} parent=5 // pred_check
        %p240 = pneg %p239
      $region38: #{transformer_encoder.1} parent=5 // pred_check_branch
        %242 = sbr.rel (%p240) target = $region40
      $region39: #{transformer_encoder.1} parent=5 // pred_region
        // Predicated region
        $region41: #{transformer_encoder.1} parent=39 // pred_check
          %p243 = pneg %p48
        $region42: #{transformer_encoder.1} parent=39 // pred_check_branch
          %245 = sbr.rel (%p243) target = $region44
        $region43: #{transformer_encoder.1} parent=39 // pred_region
          %p246 = scmp.lt.s32.totalorder %s23, 1
          %s247 = scalar_select %p246, %s23, 1
          %s248 = smul.addr %s247, 8
          %s249 = scalar_lea.vmem %s0, %s248
        $region44: #{transformer_encoder.1} parent=39 // pred_fallthru
          _
      $region40: #{transformer_encoder.1} parent=5 // pred_fallthru
        _
      %p250 = scmp.le.s32.totalorder 1, %s16
      %p251 = scmp.lt.s32.totalorder %s16, 5
      %p252 = pnand %p250, %p251
      %p253 = pneg %p252
      // Predicated region
      $region45: #{transformer_encoder.1} parent=5 // pred_check
        _
      $region46: #{transformer_encoder.1} parent=5 // pred_check_branch
        %255 = sbr.rel (%p252) target = $region48
      $region47: #{transformer_encoder.1} parent=5 // pred_region
        %s256 = ssub.s32 %s16, 1
        %p257 = scmp.lt.s32.totalorder %s25, 1
        %s258 = scalar_select %p257, %s25, 1
        %s259 = smul.addr %s258, 8
        %s260 = scalar_lea.vmem %s0, %s259
        %p261 = pneg %p54
        %p262 = pneg %p51
        %p263 = pneg %p75
        %p264 = pneg %p72
        %p265 = pneg %p96
        %p266 = pneg %p93
        %p267 = pneg %p117
        %p268 = pneg %p114
        %p269 = pneg %p138
        %p270 = pneg %p135
        %p271 = pneg %p159
        %p272 = pneg %p156
        %p273 = pneg %p180
        %p274 = pneg %p177
        %p275 = pneg %p206
        %p276 = pneg %p203
        %s277 = sand.u32 %s193, 1
        %s278 = scalar_lea.sflag [#allocation4], %s277
        %s279 = sand.u32 %s193, 1
        %s280 = smul.addr %s279, 8
        %s281 = scalar_lea.vmem [#allocation3], %s280
        %p282 = scmp.lt.s32.totalorder %s25, 1
        %s283 = scalar_select %p282, %s25, 1
        %s284 = smul.addr %s283, 8
        %s285 = scalar_lea.vmem %s0, %s284
        %p287 = scmp.eq.s32.totalorder %s26, 0
        // Predicated region
        $region49: #{transformer_encoder.1} parent=47 // pred_check
          %p288 = pneg %p287
        $region50: #{transformer_encoder.1} parent=47 // pred_check_branch
          %290 = sbr.rel (%p288) target = $region52
        $region51: #{transformer_encoder.1} parent=47 // pred_region
          %v291 = vld [vmem:[%s285] sm:$0xff]
          %vm292 = vcmask 261120
          %293 = vst.msk [vmem:[#allocation2] sm:$0xff] %vm292, %v291
        $region52: #{transformer_encoder.1} parent=47 // pred_fallthru
          _
        %v294 = vld [vmem:[#allocation2] sm:$0xff]
        %s295 = smul.u32 %s26, 4
        %s296 = smul.addr %s295, 4
        %s297 = scalar_lea.vmem %s1, %s296
        %v298 = vld [vmem:[%s297] sm:$0xf]
        %v299 = vld [vmem:[%s297 + $0x4] sm:$0xf]
        %v300 = vld [vmem:[%s297 + $0x8] sm:$0xf]
        %v301 = vld [vmem:[%s297 + $0xc] sm:$0xf]
        %s302 = smul.addr %s295, 4
        %s303 = scalar_lea.vmem %s2, %s302
        %v304 = vld [vmem:[%s303] sm:$0xf]
        %v305 = vld [vmem:[%s303 + $0x4] sm:$0xf]
        %v306 = vld [vmem:[%s303 + $0x8] sm:$0xf]
        %v307 = vld [vmem:[%s303 + $0xc] sm:$0xf]
        %s308 = smul.addr %s295, 4
        %s309 = scalar_lea.vmem %s4, %s308
        %v310 = vld [vmem:[%s309] sm:$0xf]
        %v311 = vld [vmem:[%s309 + $0x4] sm:$0xf]
        %v312 = vld [vmem:[%s309 + $0x8] sm:$0xf]
        %v313 = vld [vmem:[%s309 + $0xc] sm:$0xf]
        %s314 = scalar_lea.vmem %s3, %s26
        %v315 = vld [vmem:[%s314] sm:$0x1]
        %s316 = scalar_lea.vmem %s5, %s26
        %v317 = vld [vmem:[%s316] sm:$0x1]
        %s318 = scalar_lea.vmem %s6, %s26
        %v319 = vld [vmem:[%s318] sm:$0x1]
        %v320 = vpack.c.bf16 %v294, %v294
        %v325 = vunpack.c.l.b16 %v298
        %v326 = vunpack.c.l.b16 %v299
        %v327 = vunpack.c.l.b16 %v300
        %v328 = vunpack.c.l.b16 %v301
        %v329 = vpack.c.b16 %v326, %v325
        %v330 = vpack.c.b16 %v328, %v327
        %vm333 = vcmask 261120
        %v335 = vsel %vm333, %v320, 0
        %337 = vmatprep.subr.bf16.mxu0 0
        %338 = vmatpush1.bf16.msra.mxu0 %v329
        %339 = vmatprep.subr.bf16.mxu0 0
        %340 = vmatpush1.bf16.msra.mxu0 %v330
        %341 = vmatprep.subr.bf16.mxu0 0
        %342 = vmatpush1.bf16.msra.mxu0 0
        %343 = vmatprep.subr.bf16.mxu0 0
        %344 = vmatpush1.bf16.msra.mxu0 0
        %345 = vmatprep.subr.bf16.mxu0 0
        %346 = vmatpush1.bf16.msra.mxu0 0
        %347 = vmatprep.subr.bf16.mxu0 0
        %348 = vmatpush1.bf16.msra.mxu0 0
        %349 = vmatprep.subr.bf16.mxu0 0
        %350 = vmatpush1.bf16.msra.mxu0 0
        %351 = vmatprep.subr.bf16.mxu0 0
        %352 = vmatpush1.bf16.msra.mxu0 0
        %353 = vmatprep.subr.bf16.mxu0 0
        %354 = vmatpush1.bf16.msra.mxu0 0
        %355 = vmatprep.subr.bf16.mxu0 0
        %356 = vmatpush1.bf16.msra.mxu0 0
        %357 = vmatprep.subr.bf16.mxu0 0
        %358 = vmatpush1.bf16.msra.mxu0 0
        %359 = vmatprep.subr.bf16.mxu0 0
        %360 = vmatpush1.bf16.msra.mxu0 0
        %361 = vmatprep.subr.bf16.mxu0 0
        %362 = vmatpush1.bf16.msra.mxu0 0
        %363 = vmatprep.subr.bf16.mxu0 0
        %364 = vmatpush1.bf16.msra.mxu0 0
        %365 = vmatprep.subr.bf16.mxu0 0
        %366 = vmatpush1.bf16.msra.mxu0 0
        %367 = vmatprep.subr.bf16.mxu0 0
        %368 = vmatpush1.bf16.msra.mxu0 0
        %369 = vmatprep.mubr.bf16.mxu0 0
        %370 = vmatmul.mubr.bf16.gmra.mrb[0].mxu0 %v335
        %v371 = vpop.f32.mrb[0].mxu0
        %v372 = vadd.f32 0.0, %v371
        %v373 = vpop.f32.mrb[0].mxu0
        %v374 = vpop.f32.mrb[0].mxu0
        %v375 = vpop.f32.mrb[0].mxu0
        %376 = vdwg.mxu0
        %v377 = vpack.c.bf16 %v372, %v372
        %v379 = vlaneseq
        %v380 = vshrl.u32 %v379, 7
        %v381 = vsub.s32 0, %v380
        %v382 = vrot.slane %v315, %v381
        %385 = vrot.lane.b32.xlu0 %v377, 96
        %v386 = vpop.permute.xlu0 %385
        %vm387 = vcmask 64512
        %v389 = vsel %vm387, %v377, 0
        %v392 = vsel %vm387, %v386, 0
        %394 = vmatprep.subr.bf16.mxu0 0
        %395 = vmatpush1.bf16.xpose.msra.mxu0 %v392
        %396 = vmatprep.subr.bf16.mxu0 0
        %397 = vmatpush1.bf16.xpose.msra.mxu0 0
        %398 = vmatprep.subr.bf16.mxu0 0
        %399 = vmatpush1.bf16.xpose.msra.mxu0 0
        %400 = vmatprep.subr.bf16.mxu0 0
        %401 = vmatpush1.bf16.xpose.msra.mxu0 0
        %402 = vmatprep.subr.bf16.mxu0 0
        %403 = vmatpush1.bf16.xpose.msra.mxu0 0
        %404 = vmatprep.subr.bf16.mxu0 0
        %405 = vmatpush1.bf16.xpose.msra.mxu0 0
        %406 = vmatprep.subr.bf16.mxu0 0
        %407 = vmatpush1.bf16.xpose.msra.mxu0 0
        %408 = vmatprep.subr.bf16.mxu0 0
        %409 = vmatpush1.bf16.xpose.msra.mxu0 0
        %410 = vmatprep.subr.bf16.mxu0 0
        %411 = vmatpush1.bf16.xpose.msra.mxu0 0
        %412 = vmatprep.subr.bf16.mxu0 0
        %413 = vmatpush1.bf16.xpose.msra.mxu0 0
        %414 = vmatprep.subr.bf16.mxu0 0
        %415 = vmatpush1.bf16.xpose.msra.mxu0 0
        %416 = vmatprep.subr.bf16.mxu0 0
        %417 = vmatpush1.bf16.xpose.msra.mxu0 0
        %418 = vmatprep.subr.bf16.mxu0 0
        %419 = vmatpush1.bf16.xpose.msra.mxu0 0
        %420 = vmatprep.subr.bf16.mxu0 0
        %421 = vmatpush1.bf16.xpose.msra.mxu0 0
        %422 = vmatprep.subr.bf16.mxu0 0
        %423 = vmatpush1.bf16.xpose.msra.mxu0 0
        %424 = vmatprep.subr.bf16.mxu0 0
        %425 = vmatpush1.bf16.xpose.msra.mxu0 0
        %426 = vmatprep.mubr.bf16.mxu0 0
        %427 = vmatmul.mubr.bf16.gmra.mrb[0].mxu0 %v389
        %v428 = vpop.f32.mrb[0].mxu0
        %v429 = vadd.f32 0.0, %v428
        %v430 = vpop.f32.mrb[0].mxu0
        %v431 = vpop.f32.mrb[0].mxu0
        %v432 = vpop.f32.mrb[0].mxu0
        %433 = vdwg.mxu0
        %v434 = vsel %vm387, %v429, -inf
        %435 = vmax.xlane.f32.xlu0 %v434
        %v436 = vpop.xlane.xlu0 %435
        %v437 = vsub.f32 %v429, %v436
        %v438 = vmul.f32 %v437, 1.442695
        %v439 = vpow.pop %v438
        %v440 = vsel %vm387, %v439, 0.0
        %441 = vadd.xlane.f32.xlu0 %v440
        %v442 = vpop.xlane.xlu0 %441
        %v443 = vrcp.pop %v442
        %v444 = vmul.f32 %v439, %v443
        %v445 = vpack.c.bf16 %v444, %v444
        %446 = vrot.lane.b32.xlu0 %v377, 64
        %v447 = vpop.permute.xlu0 %446
        %v449 = vsel %vm387, %v445, 0
        %vm451 = vcmask 1043456
        %v453 = vsel %vm451, %v447, 0
        %455 = vmatprep.subr.bf16.mxu0 0
        %456 = vmatpush1.bf16.msra.mxu0 %v453
        %457 = vmatprep.subr.bf16.mxu0 0
        %458 = vmatpush1.bf16.msra.mxu0 0
        %459 = vmatprep.subr.bf16.mxu0 0
        %460 = vmatpush1.bf16.msra.mxu0 0
        %461 = vmatprep.subr.bf16.mxu0 0
        %462 = vmatpush1.bf16.msra.mxu0 0
        %463 = vmatprep.subr.bf16.mxu0 0
        %464 = vmatpush1.bf16.msra.mxu0 0
        %465 = vmatprep.subr.bf16.mxu0 0
        %466 = vmatpush1.bf16.msra.mxu0 0
        %467 = vmatprep.subr.bf16.mxu0 0
        %468 = vmatpush1.bf16.msra.mxu0 0
        %469 = vmatprep.subr.bf16.mxu0 0
        %470 = vmatpush1.bf16.msra.mxu0 0
        %471 = vmatprep.subr.bf16.mxu0 0
        %472 = vmatpush1.bf16.msra.mxu0 0
        %473 = vmatprep.subr.bf16.mxu0 0
        %474 = vmatpush1.bf16.msra.mxu0 0
        %475 = vmatprep.subr.bf16.mxu0 0
        %476 = vmatpush1.bf16.msra.mxu0 0
        %477 = vmatprep.subr.bf16.mxu0 0
        %478 = vmatpush1.bf16.msra.mxu0 0
        %479 = vmatprep.subr.bf16.mxu0 0
        %480 = vmatpush1.bf16.msra.mxu0 0
        %481 = vmatprep.subr.bf16.mxu0 0
        %482 = vmatpush1.bf16.msra.mxu0 0
        %483 = vmatprep.subr.bf16.mxu0 0
        %484 = vmatpush1.bf16.msra.mxu0 0
        %485 = vmatprep.subr.bf16.mxu0 0
        %486 = vmatpush1.bf16.msra.mxu0 0
        %487 = vmatprep.mubr.bf16.mxu0 0
        %488 = vmatmul.mubr.bf16.gmra.mrb[0].mxu0 %v449
        %v489 = vpop.f32.mrb[0].mxu0
        %v490 = vadd.f32 0.0, %v489
        %v491 = vpop.f32.mrb[0].mxu0
        %v492 = vpop.f32.mrb[0].mxu0
        %v493 = vpop.f32.mrb[0].mxu0
        %494 = vdwg.mxu0
        %v495 = vpack.c.bf16 %v490, %v490
        %v497 = vsel %vm387, %v495, 0
        %v500 = vsel %vm451, %v304, 0
        %502 = vmatprep.subr.bf16.mxu0 0
        %503 = vmatpush1.bf16.msra.mxu0 %v500
        %504 = vmatprep.subr.bf16.mxu0 0
        %505 = vmatpush1.bf16.msra.mxu0 0
        %506 = vmatprep.subr.bf16.mxu0 0
        %507 = vmatpush1.bf16.msra.mxu0 0
        %508 = vmatprep.subr.bf16.mxu0 0
        %509 = vmatpush1.bf16.msra.mxu0 0
        %510 = vmatprep.subr.bf16.mxu0 0
        %511 = vmatpush1.bf16.msra.mxu0 0
        %512 = vmatprep.subr.bf16.mxu0 0
        %513 = vmatpush1.bf16.msra.mxu0 0
        %514 = vmatprep.subr.bf16.mxu0 0
        %515 = vmatpush1.bf16.msra.mxu0 0
        %516 = vmatprep.subr.bf16.mxu0 0
        %517 = vmatpush1.bf16.msra.mxu0 0
        %518 = vmatprep.subr.bf16.mxu0 0
        %519 = vmatpush1.bf16.msra.mxu0 0
        %520 = vmatprep.subr.bf16.mxu0 0
        %521 = vmatpush1.bf16.msra.mxu0 0
        %522 = vmatprep.subr.bf16.mxu0 0
        %523 = vmatpush1.bf16.msra.mxu0 0
        %524 = vmatprep.subr.bf16.mxu0 0
        %525 = vmatpush1.bf16.msra.mxu0 0
        %526 = vmatprep.subr.bf16.mxu0 0
        %527 = vmatpush1.bf16.msra.mxu0 0
        %528 = vmatprep.subr.bf16.mxu0 0
        %529 = vmatpush1.bf16.msra.mxu0 0
        %530 = vmatprep.subr.bf16.mxu0 0
        %531 = vmatpush1.bf16.msra.mxu0 0
        %532 = vmatprep.subr.bf16.mxu0 0
        %533 = vmatpush1.bf16.msra.mxu0 0
        %534 = vmatprep.mubr.bf16.mxu0 0
        %535 = vmatmul.mubr.bf16.gmra.mrb[0].mxu0 %v497
        %v536 = vpop.f32.mrb[0].mxu0
        %v537 = vadd.f32 0.0, %v536
        %v538 = vpop.f32.mrb[0].mxu0
        %v539 = vpop.f32.mrb[0].mxu0
        %v540 = vpop.f32.mrb[0].mxu0
        %541 = vdwg.mxu0
        %v542 = vadd.f32 %v382, %v537
        %543 = vrot.lane.b32.xlu0 %v377, 120
        %v544 = vpop.permute.xlu0 %543
        %545 = vrot.lane.b32.xlu0 %v377, 88
        %v546 = vpop.permute.xlu0 %545
        %v548 = vsel %vm387, %v544, 0
        %v551 = vsel %vm387, %v546, 0
        %553 = vmatprep.subr.bf16.mxu0 0
        %554 = vmatpush1.bf16.xpose.msra.mxu0 %v551
        %555 = vmatprep.subr.bf16.mxu0 0
        %556 = vmatpush1.bf16.xpose.msra.mxu0 0
        %557 = vmatprep.subr.bf16.mxu0 0
        %558 = vmatpush1.bf16.xpose.msra.mxu0 0
        %559 = vmatprep.subr.bf16.mxu0 0
        %560 = vmatpush1.bf16.xpose.msra.mxu0 0
        %561 = vmatprep.subr.bf16.mxu0 0
        %562 = vmatpush1.bf16.xpose.msra.mxu0 0
        %563 = vmatprep.subr.bf16.mxu0 0
        %564 = vmatpush1.bf16.xpose.msra.mxu0 0
        %565 = vmatprep.subr.bf16.mxu0 0
        %566 = vmatpush1.bf16.xpose.msra.mxu0 0
        %567 = vmatprep.subr.bf16.mxu0 0
        %568 = vmatpush1.bf16.xpose.msra.mxu0 0
        %569 = vmatprep.subr.bf16.mxu0 0
        %570 = vmatpush1.bf16.xpose.msra.mxu0 0
        %571 = vmatprep.subr.bf16.mxu0 0
        %572 = vmatpush1.bf16.xpose.msra.mxu0 0
        %573 = vmatprep.subr.bf16.mxu0 0
        %574 = vmatpush1.bf16.xpose.msra.mxu0 0
        %575 = vmatprep.subr.bf16.mxu0 0
        %576 = vmatpush1.bf16.xpose.msra.mxu0 0
        %577 = vmatprep.subr.bf16.mxu0 0
        %578 = vmatpush1.bf16.xpose.msra.mxu0 0
        %579 = vmatprep.subr.bf16.mxu0 0
        %580 = vmatpush1.bf16.xpose.msra.mxu0 0
        %581 = vmatprep.subr.bf16.mxu0 0
        %582 = vmatpush1.bf16.xpose.msra.mxu0 0
        %583 = vmatprep.subr.bf16.mxu0 0
        %584 = vmatpush1.bf16.xpose.msra.mxu0 0
        %585 = vmatprep.mubr.bf16.mxu0 0
        %586 = vmatmul.mubr.bf16.gmra.mrb[0].mxu0 %v548
        %v587 = vpop.f32.mrb[0].mxu0
        %v588 = vadd.f32 0.0, %v587
        %v589 = vpop.f32.mrb[0].mxu0
        %v590 = vpop.f32.mrb[0].mxu0
        %v591 = vpop.f32.mrb[0].mxu0
        %592 = vdwg.mxu0
        %v593 = vsel %vm387, %v588, -inf
        %594 = vmax.xlane.f32.xlu0 %v593
        %v595 = vpop.xlane.xlu0 %594
        %v596 = vsub.f32 %v588, %v595
        %v597 = vmul.f32 %v596, 1.442695
        %v598 = vpow.pop %v597
        %v599 = vsel %vm387, %v598, 0.0
        %600 = vadd.xlane.f32.xlu0 %v599
        %v601 = vpop.xlane.xlu0 %600
        %v602 = vrcp.pop %v601
        %v603 = vmul.f32 %v598, %v602
        %v604 = vpack.c.bf16 %v603, %v603
        %605 = vrot.lane.b32.xlu0 %v377, 56
        %v606 = vpop.permute.xlu0 %605
        %v608 = vsel %vm387, %v604, 0
        %v611 = vsel %vm451, %v606, 0
        %613 = vmatprep.subr.bf16.mxu0 0
        %614 = vmatpush1.bf16.msra.mxu0 %v611
        %615 = vmatprep.subr.bf16.mxu0 0
        %616 = vmatpush1.bf16.msra.mxu0 0
        %617 = vmatprep.subr.bf16.mxu0 0
        %618 = vmatpush1.bf16.msra.mxu0 0
        %619 = vmatprep.subr.bf16.mxu0 0
        %620 = vmatpush1.bf16.msra.mxu0 0
        %621 = vmatprep.subr.bf16.mxu0 0
        %622 = vmatpush1.bf16.msra.mxu0 0
        %623 = vmatprep.subr.bf16.mxu0 0
        %624 = vmatpush1.bf16.msra.mxu0 0
        %625 = vmatprep.subr.bf16.mxu0 0
        %626 = vmatpush1.bf16.msra.mxu0 0
        %627 = vmatprep.subr.bf16.mxu0 0
        %628 = vmatpush1.bf16.msra.mxu0 0
        %629 = vmatprep.subr.bf16.mxu0 0
        %630 = vmatpush1.bf16.msra.mxu0 0
        %631 = vmatprep.subr.bf16.mxu0 0
        %632 = vmatpush1.bf16.msra.mxu0 0
        %633 = vmatprep.subr.bf16.mxu0 0
        %634 = vmatpush1.bf16.msra.mxu0 0
        %635 = vmatprep.subr.bf16.mxu0 0
        %636 = vmatpush1.bf16.msra.mxu0 0
        %637 = vmatprep.subr.bf16.mxu0 0
        %638 = vmatpush1.bf16.msra.mxu0 0
        %639 = vmatprep.subr.bf16.mxu0 0
        %640 = vmatpush1.bf16.msra.mxu0 0
        %641 = vmatprep.subr.bf16.mxu0 0
        %642 = vmatpush1.bf16.msra.mxu0 0
        %643 = vmatprep.subr.bf16.mxu0 0
        %644 = vmatpush1.bf16.msra.mxu0 0
        %645 = vmatprep.mubr.bf16.mxu0 0
        %646 = vmatmul.mubr.bf16.gmra.mrb[0].mxu0 %v608
        %v647 = vpop.f32.mrb[0].mxu0
        %v648 = vadd.f32 0.0, %v647
        %v649 = vpop.f32.mrb[0].mxu0
        %v650 = vpop.f32.mrb[0].mxu0
        %v651 = vpop.f32.mrb[0].mxu0
        %652 = vdwg.mxu0
        %v653 = vpack.c.bf16 %v648, %v648
        %v655 = vsel %vm387, %v653, 0
        %v658 = vsel %vm451, %v305, 0
        %660 = vmatprep.subr.bf16.mxu0 0
        %661 = vmatpush1.bf16.msra.mxu0 %v658
        %662 = vmatprep.subr.bf16.mxu0 0
        %663 = vmatpush1.bf16.msra.mxu0 0
        %664 = vmatprep.subr.bf16.mxu0 0
        %665 = vmatpush1.bf16.msra.mxu0 0
        %666 = vmatprep.subr.bf16.mxu0 0
        %667 = vmatpush1.bf16.msra.mxu0 0
        %668 = vmatprep.subr.bf16.mxu0 0
        %669 = vmatpush1.bf16.msra.mxu0 0
        %670 = vmatprep.subr.bf16.mxu0 0
        %671 = vmatpush1.bf16.msra.mxu0 0
        %672 = vmatprep.subr.bf16.mxu0 0
        %673 = vmatpush1.bf16.msra.mxu0 0
        %674 = vmatprep.subr.bf16.mxu0 0
        %675 = vmatpush1.bf16.msra.mxu0 0
        %676 = vmatprep.subr.bf16.mxu0 0
        %677 = vmatpush1.bf16.msra.mxu0 0
        %678 = vmatprep.subr.bf16.mxu0 0
        %679 = vmatpush1.bf16.msra.mxu0 0
        %680 = vmatprep.subr.bf16.mxu0 0
        %681 = vmatpush1.bf16.msra.mxu0 0
        %682 = vmatprep.subr.bf16.mxu0 0
        %683 = vmatpush1.bf16.msra.mxu0 0
        %684 = vmatprep.subr.bf16.mxu0 0
        %685 = vmatpush1.bf16.msra.mxu0 0
        %686 = vmatprep.subr.bf16.mxu0 0
        %687 = vmatpush1.bf16.msra.mxu0 0
        %688 = vmatprep.subr.bf16.mxu0 0
        %689 = vmatpush1.bf16.msra.mxu0 0
        %690 = vmatprep.subr.bf16.mxu0 0
        %691 = vmatpush1.bf16.msra.mxu0 0
        %692 = vmatprep.mubr.bf16.mxu0 0
        %693 = vmatmul.mubr.bf16.gmra.mrb[0].mxu0 %v655
        %v694 = vpop.f32.mrb[0].mxu0
        %v695 = vadd.f32 0.0, %v694
        %v696 = vpop.f32.mrb[0].mxu0
        %v697 = vpop.f32.mrb[0].mxu0
        %v698 = vpop.f32.mrb[0].mxu0
        %699 = vdwg.mxu0
        %v700 = vadd.f32 %v542, %v695
        %701 = vrot.lane.b32.xlu0 %v377, 112
        %v702 = vpop.permute.xlu0 %701
        %703 = vrot.lane.b32.xlu0 %v377, 80
        %v704 = vpop.permute.xlu0 %703
        %v706 = vsel %vm387, %v702, 0
        %v709 = vsel %vm387, %v704, 0
        %711 = vmatprep.subr.bf16.mxu0 0
        %712 = vmatpush1.bf16.xpose.msra.mxu0 %v709
        %713 = vmatprep.subr.bf16.mxu0 0
        %714 = vmatpush1.bf16.xpose.msra.mxu0 0
        %715 = vmatprep.subr.bf16.mxu0 0
        %716 = vmatpush1.bf16.xpose.msra.mxu0 0
        %717 = vmatprep.subr.bf16.mxu0 0
        %718 = vmatpush1.bf16.xpose.msra.mxu0 0
        %719 = vmatprep.subr.bf16.mxu0 0
        %720 = vmatpush1.bf16.xpose.msra.mxu0 0
        %721 = vmatprep.subr.bf16.mxu0 0
        %722 = vmatpush1.bf16.xpose.msra.mxu0 0
        %723 = vmatprep.subr.bf16.mxu0 0
        %724 = vmatpush1.bf16.xpose.msra.mxu0 0
        %725 = vmatprep.subr.bf16.mxu0 0
        %726 = vmatpush1.bf16.xpose.msra.mxu0 0
        %727 = vmatprep.subr.bf16.mxu0 0
        %728 = vmatpush1.bf16.xpose.msra.mxu0 0
        %729 = vmatprep.subr.bf16.mxu0 0
        %730 = vmatpush1.bf16.xpose.msra.mxu0 0
        %731 = vmatprep.subr.bf16.mxu0 0
        %732 = vmatpush1.bf16.xpose.msra.mxu0 0
        %733 = vmatprep.subr.bf16.mxu0 0
        %734 = vmatpush1.bf16.xpose.msra.mxu0 0
        %735 = vmatprep.subr.bf16.mxu0 0
        %736 = vmatpush1.bf16.xpose.msra.mxu0 0
        %737 = vmatprep.subr.bf16.mxu0 0
        %738 = vmatpush1.bf16.xpose.msra.mxu0 0
        %739 = vmatprep.subr.bf16.mxu0 0
        %740 = vmatpush1.bf16.xpose.msra.mxu0 0
        %741 = vmatprep.subr.bf16.mxu0 0
        %742 = vmatpush1.bf16.xpose.msra.mxu0 0
        %743 = vmatprep.mubr.bf16.mxu0 0
        %744 = vmatmul.mubr.bf16.gmra.mrb[0].mxu0 %v706
        %v745 = vpop.f32.mrb[0].mxu0
        %v746 = vadd.f32 0.0, %v745
        %v747 = vpop.f32.mrb[0].mxu0
        %v748 = vpop.f32.mrb[0].mxu0
        %v749 = vpop.f32.mrb[0].mxu0
        %750 = vdwg.mxu0
        %v751 = vsel %vm387, %v746, -inf
        %752 = vmax.xlane.f32.xlu0 %v751
        %v753 = vpop.xlane.xlu0 %752
        %v754 = vsub.f32 %v746, %v753
        %v755 = vmul.f32 %v754, 1.442695
        %v756 = vpow.pop %v755
        %v757 = vsel %vm387, %v756, 0.0
        %758 = vadd.xlane.f32.xlu0 %v757
        %v759 = vpop.xlane.xlu0 %758
        %v760 = vrcp.pop %v759
        %v761 = vmul.f32 %v756, %v760
        %v762 = vpack.c.bf16 %v761, %v761
        %763 = vrot.lane.b32.xlu0 %v377, 48
        %v764 = vpop.permute.xlu0 %763
        %v766 = vsel %vm387, %v762, 0
        %v769 = vsel %vm451, %v764, 0
        %771 = vmatprep.subr.bf16.mxu0 0
        %772 = vmatpush1.bf16.msra.mxu0 %v769
        %773 = vmatprep.subr.bf16.mxu0 0
        %774 = vmatpush1.bf16.msra.mxu0 0
        %775 = vmatprep.subr.bf16.mxu0 0
        %776 = vmatpush1.bf16.msra.mxu0 0
        %777 = vmatprep.subr.bf16.mxu0 0
        %778 = vmatpush1.bf16.msra.mxu0 0
        %779 = vmatprep.subr.bf16.mxu0 0
        %780 = vmatpush1.bf16.msra.mxu0 0
        %781 = vmatprep.subr.bf16.mxu0 0
        %782 = vmatpush1.bf16.msra.mxu0 0
        %783 = vmatprep.subr.bf16.mxu0 0
        %784 = vmatpush1.bf16.msra.mxu0 0
        %785 = vmatprep.subr.bf16.mxu0 0
        %786 = vmatpush1.bf16.msra.mxu0 0
        %787 = vmatprep.subr.bf16.mxu0 0
        %788 = vmatpush1.bf16.msra.mxu0 0
        %789 = vmatprep.subr.bf16.mxu0 0
        %790 = vmatpush1.bf16.msra.mxu0 0
        %791 = vmatprep.subr.bf16.mxu0 0
        %792 = vmatpush1.bf16.msra.mxu0 0
        %793 = vmatprep.subr.bf16.mxu0 0
        %794 = vmatpush1.bf16.msra.mxu0 0
        %795 = vmatprep.subr.bf16.mxu0 0
        %796 = vmatpush1.bf16.msra.mxu0 0
        %797 = vmatprep.subr.bf16.mxu0 0
        %798 = vmatpush1.bf16.msra.mxu0 0
        %799 = vmatprep.subr.bf16.mxu0 0
        %800 = vmatpush1.bf16.msra.mxu0 0
        %801 = vmatprep.subr.bf16.mxu0 0
        %802 = vmatpush1.bf16.msra.mxu0 0
        %803 = vmatprep.mubr.bf16.mxu0 0
        %804 = vmatmul.mubr.bf16.gmra.mrb[0].mxu0 %v766
        %v805 = vpop.f32.mrb[0].mxu0
        %v806 = vadd.f32 0.0, %v805
        %v807 = vpop.f32.mrb[0].mxu0
        %v808 = vpop.f32.mrb[0].mxu0
        %v809 = vpop.f32.mrb[0].mxu0
        %810 = vdwg.mxu0
        %v811 = vpack.c.bf16 %v806, %v806
        %v813 = vsel %vm387, %v811, 0
        %v816 = vsel %vm451, %v306, 0
        %818 = vmatprep.subr.bf16.mxu0 0
        %819 = vmatpush1.bf16.msra.mxu0 %v816
        %820 = vmatprep.subr.bf16.mxu0 0
        %821 = vmatpush1.bf16.msra.mxu0 0
        %822 = vmatprep.subr.bf16.mxu0 0
        %823 = vmatpush1.bf16.msra.mxu0 0
        %824 = vmatprep.subr.bf16.mxu0 0
        %825 = vmatpush1.bf16.msra.mxu0 0
        %826 = vmatprep.subr.bf16.mxu0 0
        %827 = vmatpush1.bf16.msra.mxu0 0
        %828 = vmatprep.subr.bf16.mxu0 0
        %829 = vmatpush1.bf16.msra.mxu0 0
        %830 = vmatprep.subr.bf16.mxu0 0
        %831 = vmatpush1.bf16.msra.mxu0 0
        %832 = vmatprep.subr.bf16.mxu0 0
        %833 = vmatpush1.bf16.msra.mxu0 0
        %834 = vmatprep.subr.bf16.mxu0 0
        %835 = vmatpush1.bf16.msra.mxu0 0
        %836 = vmatprep.subr.bf16.mxu0 0
        %837 = vmatpush1.bf16.msra.mxu0 0
        %838 = vmatprep.subr.bf16.mxu0 0
        %839 = vmatpush1.bf16.msra.mxu0 0
        %840 = vmatprep.subr.bf16.mxu0 0
        %841 = vmatpush1.bf16.msra.mxu0 0
        %842 = vmatprep.subr.bf16.mxu0 0
        %843 = vmatpush1.bf16.msra.mxu0 0
        %844 = vmatprep.subr.bf16.mxu0 0
        %845 = vmatpush1.bf16.msra.mxu0 0
        %846 = vmatprep.subr.bf16.mxu0 0
        %847 = vmatpush1.bf16.msra.mxu0 0
        %848 = vmatprep.subr.bf16.mxu0 0
        %849 = vmatpush1.bf16.msra.mxu0 0
        %850 = vmatprep.mubr.bf16.mxu0 0
        %851 = vmatmul.mubr.bf16.gmra.mrb[0].mxu0 %v813
        %v852 = vpop.f32.mrb[0].mxu0
        %v853 = vadd.f32 0.0, %v852
        %v854 = vpop.f32.mrb[0].mxu0
        %v855 = vpop.f32.mrb[0].mxu0
        %v856 = vpop.f32.mrb[0].mxu0
        %857 = vdwg.mxu0
        %v858 = vadd.f32 %v700, %v853
        %859 = vrot.lane.b32.xlu0 %v377, 104
        %v860 = vpop.permute.xlu0 %859
        %861 = vrot.lane.b32.xlu0 %v377, 72
        %v862 = vpop.permute.xlu0 %861
        %v864 = vsel %vm387, %v860, 0
        %v867 = vsel %vm387, %v862, 0
        %869 = vmatprep.subr.bf16.mxu0 0
        %870 = vmatpush1.bf16.xpose.msra.mxu0 %v867
        %871 = vmatprep.subr.bf16.mxu0 0
        %872 = vmatpush1.bf16.xpose.msra.mxu0 0
        %873 = vmatprep.subr.bf16.mxu0 0
        %874 = vmatpush1.bf16.xpose.msra.mxu0 0
        %875 = vmatprep.subr.bf16.mxu0 0
        %876 = vmatpush1.bf16.xpose.msra.mxu0 0
        %877 = vmatprep.subr.bf16.mxu0 0
        %878 = vmatpush1.bf16.xpose.msra.mxu0 0
        %879 = vmatprep.subr.bf16.mxu0 0
        %880 = vmatpush1.bf16.xpose.msra.mxu0 0
        %881 = vmatprep.subr.bf16.mxu0 0
        %882 = vmatpush1.bf16.xpose.msra.mxu0 0
        %883 = vmatprep.subr.bf16.mxu0 0
        %884 = vmatpush1.bf16.xpose.msra.mxu0 0
        %885 = vmatprep.subr.bf16.mxu0 0
        %886 = vmatpush1.bf16.xpose.msra.mxu0 0
        %887 = vmatprep.subr.bf16.mxu0 0
        %888 = vmatpush1.bf16.xpose.msra.mxu0 0
        %889 = vmatprep.subr.bf16.mxu0 0
        %890 = vmatpush1.bf16.xpose.msra.mxu0 0
        %891 = vmatprep.subr.bf16.mxu0 0
        %892 = vmatpush1.bf16.xpose.msra.mxu0 0
        %893 = vmatprep.subr.bf16.mxu0 0
        %894 = vmatpush1.bf16.xpose.msra.mxu0 0
        %895 = vmatprep.subr.bf16.mxu0 0
        %896 = vmatpush1.bf16.xpose.msra.mxu0 0
        %897 = vmatprep.subr.bf16.mxu0 0
        %898 = vmatpush1.bf16.xpose.msra.mxu0 0
        %899 = vmatprep.subr.bf16.mxu0 0
        %900 = vmatpush1.bf16.xpose.msra.mxu0 0
        %901 = vmatprep.mubr.bf16.mxu0 0
        %902 = vmatmul.mubr.bf16.gmra.mrb[0].mxu0 %v864
        %v903 = vpop.f32.mrb[0].mxu0
        %v904 = vadd.f32 0.0, %v903
        %v905 = vpop.f32.mrb[0].mxu0
        %v906 = vpop.f32.mrb[0].mxu0
        %v907 = vpop.f32.mrb[0].mxu0
        %908 = vdwg.mxu0
        %v909 = vsel %vm387, %v904, -inf
        %910 = vmax.xlane.f32.xlu0 %v909
        %v911 = vpop.xlane.xlu0 %910
        %v912 = vsub.f32 %v904, %v911
        %v913 = vmul.f32 %v912, 1.442695
        %v914 = vpow.pop %v913
        %v915 = vsel %vm387, %v914, 0.0
        %916 = vadd.xlane.f32.xlu0 %v915
        %v917 = vpop.xlane.xlu0 %916
        %v918 = vrcp.pop %v917
        %v919 = vmul.f32 %v914, %v918
        %v920 = vpack.c.bf16 %v919, %v919
        %921 = vrot.lane.b32.xlu0 %v377, 40
        %v922 = vpop.permute.xlu0 %921
        %v924 = vsel %vm387, %v920, 0
        %v927 = vsel %vm451, %v922, 0
        %929 = vmatprep.subr.bf16.mxu0 0
        %930 = vmatpush1.bf16.msra.mxu0 %v927
        %931 = vmatprep.subr.bf16.mxu0 0
        %932 = vmatpush1.bf16.msra.mxu0 0
        %933 = vmatprep.subr.bf16.mxu0 0
        %934 = vmatpush1.bf16.msra.mxu0 0
        %935 = vmatprep.subr.bf16.mxu0 0
        %936 = vmatpush1.bf16.msra.mxu0 0
        %937 = vmatprep.subr.bf16.mxu0 0
        %938 = vmatpush1.bf16.msra.mxu0 0
        %939 = vmatprep.subr.bf16.mxu0 0
        %940 = vmatpush1.bf16.msra.mxu0 0
        %941 = vmatprep.subr.bf16.mxu0 0
        %942 = vmatpush1.bf16.msra.mxu0 0
        %943 = vmatprep.subr.bf16.mxu0 0
        %944 = vmatpush1.bf16.msra.mxu0 0
        %945 = vmatprep.subr.bf16.mxu0 0
        %946 = vmatpush1.bf16.msra.mxu0 0
        %947 = vmatprep.subr.bf16.mxu0 0
        %948 = vmatpush1.bf16.msra.mxu0 0
        %949 = vmatprep.subr.bf16.mxu0 0
        %950 = vmatpush1.bf16.msra.mxu0 0
        %951 = vmatprep.subr.bf16.mxu0 0
        %952 = vmatpush1.bf16.msra.mxu0 0
        %953 = vmatprep.subr.bf16.mxu0 0
        %954 = vmatpush1.bf16.msra.mxu0 0
        %955 = vmatprep.subr.bf16.mxu0 0
        %956 = vmatpush1.bf16.msra.mxu0 0
        %957 = vmatprep.subr.bf16.mxu0 0
        %958 = vmatpush1.bf16.msra.mxu0 0
        %959 = vmatprep.subr.bf16.mxu0 0
        %960 = vmatpush1.bf16.msra.mxu0 0
        %961 = vmatprep.mubr.bf16.mxu0 0
        %962 = vmatmul.mubr.bf16.gmra.mrb[0].mxu0 %v924
        %v963 = vpop.f32.mrb[0].mxu0
        %v964 = vadd.f32 0.0, %v963
        %v965 = vpop.f32.mrb[0].mxu0
        %v966 = vpop.f32.mrb[0].mxu0
        %v967 = vpop.f32.mrb[0].mxu0
        %968 = vdwg.mxu0
        %v969 = vpack.c.bf16 %v964, %v964
        %v971 = vsel %vm387, %v969, 0
        %v974 = vsel %vm451, %v307, 0
        %976 = vmatprep.subr.bf16.mxu0 0
        %977 = vmatpush1.bf16.msra.mxu0 %v974
        %978 = vmatprep.subr.bf16.mxu0 0
        %979 = vmatpush1.bf16.msra.mxu0 0
        %980 = vmatprep.subr.bf16.mxu0 0
        %981 = vmatpush1.bf16.msra.mxu0 0
        %982 = vmatprep.subr.bf16.mxu0 0
        %983 = vmatpush1.bf16.msra.mxu0 0
        %984 = vmatprep.subr.bf16.mxu0 0
        %985 = vmatpush1.bf16.msra.mxu0 0
        %986 = vmatprep.subr.bf16.mxu0 0
        %987 = vmatpush1.bf16.msra.mxu0 0
        %988 = vmatprep.subr.bf16.mxu0 0
        %989 = vmatpush1.bf16.msra.mxu0 0
        %990 = vmatprep.subr.bf16.mxu0 0
        %991 = vmatpush1.bf16.msra.mxu0 0
        %992 = vmatprep.subr.bf16.mxu0 0
        %993 = vmatpush1.bf16.msra.mxu0 0
        %994 = vmatprep.subr.bf16.mxu0 0
        %995 = vmatpush1.bf16.msra.mxu0 0
        %996 = vmatprep.subr.bf16.mxu0 0
        %997 = vmatpush1.bf16.msra.mxu0 0
        %998 = vmatprep.subr.bf16.mxu0 0
        %999 = vmatpush1.bf16.msra.mxu0 0
        %1000 = vmatprep.subr.bf16.mxu0 0
        %1001 = vmatpush1.bf16.msra.mxu0 0
        %1002 = vmatprep.subr.bf16.mxu0 0
        %1003 = vmatpush1.bf16.msra.mxu0 0
        %1004 = vmatprep.subr.bf16.mxu0 0
        %1005 = vmatpush1.bf16.msra.mxu0 0
        %1006 = vmatprep.subr.bf16.mxu0 0
        %1007 = vmatpush1.bf16.msra.mxu0 0
        %1008 = vmatprep.mubr.bf16.mxu0 0
        %1009 = vmatmul.mubr.bf16.gmra.mrb[0].mxu0 %v971
        %v1010 = vpop.f32.mrb[0].mxu0
        %v1011 = vadd.f32 0.0, %v1010
        %v1012 = vpop.f32.mrb[0].mxu0
        %v1013 = vpop.f32.mrb[0].mxu0
        %v1014 = vpop.f32.mrb[0].mxu0
        %1015 = vdwg.mxu0
        %v1016 = vadd.f32 %v858, %v1011
        %v1017 = vadd.f32 %v294, %v1016
        %v1018 = vmul.f32 %v1017, %v1017
        %v1019 = vsel %vm333, %v1018, 0.0
        %1020 = vadd.xlane.f32.xlu0 %v1019
        %v1021 = vpop.xlane.xlu0 %1020
        %v1022 = vrcp.pop 32.0
        %v1023 = vmul.f32 %v1021, %v1022
        %v1024 = vadd.f32 %v1023, 1e-06
        %v1025 = vrsqrt.pop %v1024
        %v1026 = vmul.f32 %v1017, %v1025
        %v1028 = vlaneseq
        %v1029 = vshrl.u32 %v1028, 7
        %v1030 = vsub.s32 0, %v1029
        %v1031 = vrot.slane %v317, %v1030
        %v1033 = vmul.f32 %v1026, %v1031
        %1034 = vst.msk [vmem:[#allocation2] sm:$0xff] %vm333, %v1033
        %v1035 = vld [vmem:[#allocation2] sm:$0xff]
        %v1036 = vpack.c.bf16 %v1035, %v1035
        %v1041 = vunpack.c.l.b16 %v310
        %v1042 = vunpack.c.l.b16 %v311
        %v1043 = vunpack.c.l.b16 %v312
        %v1044 = vunpack.c.l.b16 %v313
        %v1045 = vpack.c.b16 %v1042, %v1041
        %v1046 = vpack.c.b16 %v1044, %v1043
        %v1050 = vsel %vm333, %v1036, 0
        %1052 = vmatprep.subr.bf16.mxu0 0
        %1053 = vmatpush1.bf16.msra.mxu0 %v1045
        %1054 = vmatprep.subr.bf16.mxu0 0
        %1055 = vmatpush1.bf16.msra.mxu0 %v1046
        %1056 = vmatprep.subr.bf16.mxu0 0
        %1057 = vmatpush1.bf16.msra.mxu0 0
        %1058 = vmatprep.subr.bf16.mxu0 0
        %1059 = vmatpush1.bf16.msra.mxu0 0
        %1060 = vmatprep.subr.bf16.mxu0 0
        %1061 = vmatpush1.bf16.msra.mxu0 0
        %1062 = vmatprep.subr.bf16.mxu0 0
        %1063 = vmatpush1.bf16.msra.mxu0 0
        %1064 = vmatprep.subr.bf16.mxu0 0
        %1065 = vmatpush1.bf16.msra.mxu0 0
        %1066 = vmatprep.subr.bf16.mxu0 0
        %1067 = vmatpush1.bf16.msra.mxu0 0
        %1068 = vmatprep.subr.bf16.mxu0 0
        %1069 = vmatpush1.bf16.msra.mxu0 0
        %1070 = vmatprep.subr.bf16.mxu0 0
        %1071 = vmatpush1.bf16.msra.mxu0 0
        %1072 = vmatprep.subr.bf16.mxu0 0
        %1073 = vmatpush1.bf16.msra.mxu0 0
        %1074 = vmatprep.subr.bf16.mxu0 0
        %1075 = vmatpush1.bf16.msra.mxu0 0
        %1076 = vmatprep.subr.bf16.mxu0 0
        %1077 = vmatpush1.bf16.msra.mxu0 0
        %1078 = vmatprep.subr.bf16.mxu0 0
        %1079 = vmatpush1.bf16.msra.mxu0 0
        %1080 = vmatprep.subr.bf16.mxu0 0
        %1081 = vmatpush1.bf16.msra.mxu0 0
        %1082 = vmatprep.subr.bf16.mxu0 0
        %1083 = vmatpush1.bf16.msra.mxu0 0
        %1084 = vmatprep.mubr.bf16.mxu0 0
        %1085 = vmatmul.mubr.bf16.gmra.mrb[0].mxu0 %v1050
        %v1086 = vpop.f32.mrb[0].mxu0
        %v1087 = vadd.f32 0.0, %v1086
        %v1088 = vpop.f32.mrb[0].mxu0
        %v1089 = vpop.f32.mrb[0].mxu0
        %v1090 = vpop.f32.mrb[0].mxu0
        %1091 = vdwg.mxu0
        %v1092 = vadd.f32 %v1035, %v1087
        %v1093 = vmul.f32 %v1092, %v1092
        %v1094 = vsel %vm333, %v1093, 0.0
        %1095 = vadd.xlane.f32.xlu0 %v1094
        %v1096 = vpop.xlane.xlu0 %1095
        %v1097 = vmul.f32 %v1096, %v1022
        %v1098 = vadd.f32 %v1097, 1e-06
        %v1099 = vrsqrt.pop %v1098
        %v1100 = vmul.f32 %v1092, %v1099
        %v1102 = vlaneseq
        %v1103 = vshrl.u32 %v1102, 7
        %v1104 = vsub.s32 0, %v1103
        %v1105 = vrot.slane %v319, %v1104
        %v1107 = vmul.f32 %v1100, %v1105
        %1108 = vst.msk [vmem:[#allocation2] sm:$0xff] %vm333, %v1107
        %p1109 = scmp.eq.s32.totalorder %s26, 1
        // Predicated region
        $region53: #{transformer_encoder.1} parent=47 // pred_check
          %p1110 = pneg %p1109
        $region54: #{transformer_encoder.1} parent=47 // pred_check_branch
          %1112 = sbr.rel (%p1110) target = $region56
        $region55: #{transformer_encoder.1} parent=47 // pred_region
          %1113 = vst.msk [vmem:[%s281] sm:$0xff] %vm333, %v1107
        $region56: #{transformer_encoder.1} parent=47 // pred_fallthru
          _
        %s1114 = sand.u32 %s193, 1
        %s1115 = scalar_lea.sflag [#allocation4], %s1114
        %s1116 = sand.u32 %s193, 1
        %s1117 = smul.addr %s1116, 8
        %s1118 = scalar_lea.vmem [#allocation3], %s1117
        // Predicated region
        $region57: #{transformer_encoder.1} parent=47 // pred_check
          %p1119 = pneg %p203
        $region58: #{transformer_encoder.1} parent=47 // pred_check_branch
          %1121 = sbr.rel (%p1119) target = $region60
        $region59: #{transformer_encoder.1} parent=47 // pred_region
          %s1123 = ssub.s32 128, 128
          %1124 = vsyncadd %s1115, %s1123
          %s1125 = smul.addr %s25, 128
          %s1126 = scalar_lea.hbm %s7, %s1125
          %s1128 = sshll.u32 %s1118, 4
          %s1129 = int_to_ptr.vmem [resolvable:$true] %s1128
          %1131 = dma.vmem_to_hbm [thread:$0]  %s1129, 128, %s1126, %s1115
        $region60: #{transformer_encoder.1} parent=47 // pred_fallthru
          _
      $region48: #{transformer_encoder.1} parent=5 // pred_fallthru
        _
      %p1132 = scmp.le.s32.totalorder 2, %s16
      // Predicated region
      $region61: #{transformer_encoder.1} parent=5 // pred_check
        %p1133 = pneg %p1132
      $region62: #{transformer_encoder.1} parent=5 // pred_check_branch
        %1135 = sbr.rel (%p1133) target = $region64
      $region63: #{transformer_encoder.1} parent=5 // pred_region
        %s1136 = ssub.s32 %s16, 2
        // Predicated region
        $region65: #{transformer_encoder.1} parent=63 // pred_check
          %p1137 = pneg %p209
        $region66: #{transformer_encoder.1} parent=63 // pred_check_branch
          %1139 = sbr.rel (%p1137) target = $region68
        $region67: #{transformer_encoder.1} parent=63 // pred_region
          %s1140 = sand.u32 %s194, 1
          %s1141 = scalar_lea.sflag [#allocation4], %s1140
          %s1142 = sand.u32 %s194, 1
          %s1143 = smul.addr %s1142, 8
          %s1144 = scalar_lea.vmem [#allocation3], %s1143
          %1145 = dma.done %s1141, 128
        $region68: #{transformer_encoder.1} parent=63 // pred_fallthru
          _
      $region64: #{transformer_encoder.1} parent=5 // pred_fallthru
        _
    $region6: #{transformer_encoder.1} parent=1 // loop_footer
      %s20 = sadd.s32 1, %s16
    $region7: #{transformer_encoder.1} parent=1 // loop_footer_branch
      %15 = sbr.rel target = $region3
    $region8: #{transformer_encoder.1} parent=1 // loop_exit
      _
    %1146 = vsyncpa [#allocation4], 1
    %s1147 = scalar_lea.sflag [#allocation4], 1
    %1148 = vsyncpa %s1147, 1

</llo_original>
